<compile_context>
chip_gen: v7x
topology: tpu7x:2x2x1
jax: 0.10.0
libtpu: 0.0.40
codegen_flags: <defaults>
</compile_context>

<pallas_src>
import functools
import math

import jax
import jax.numpy as jnp
from jax.experimental import pallas as pl
from jax.experimental.pallas import tpu as pltpu

# Small, TPU-friendly shapes consistent with the module (dim divisible by 16 heads).
BATCH = 2
SEQ = 16          # num_image_tokens
DIM = 128         # "768" in the original module
HIDDEN = 256      # "1536" in the original module (2x dim)
NUM_HEADS = 16
HEAD_DIM = DIM // NUM_HEADS
EPS = 1e-12       # nn.LayerNorm(dim, eps=1e-12)


def _layernorm(x, gamma, beta):
    # torch.nn.LayerNorm: biased variance, eps inside sqrt
    mean = jnp.mean(x, axis=-1, keepdims=True)
    var = jnp.mean(jnp.square(x - mean), axis=-1, keepdims=True)
    return (x - mean) * jax.lax.rsqrt(var + EPS) * gamma + beta


def _gelu_tanh(x):
    # TODO(synk): torch.nn.GELU defaults to the exact erf form; the tanh approximation is
    # used in-kernel since erf is not guaranteed to lower in Mosaic (max diff ~1e-3).
    return 0.5 * x * (1.0 + jnp.tanh(0.7978845608028654 * (x + 0.044715 * x * x * x)))


def encoder_kernel(x_ref,
                   wqkv_ref, bqkv_ref, wo_ref, bo_ref,
                   g1_ref, be1_ref,
                   w1_ref, b1_ref, w2_ref, b2_ref,
                   g2_ref, be2_ref,
                   grep_ref, grept_ref, kmask_ref, vmask_ref,
                   o_ref, *, dim):
    # One batch element per grid step: x is (T, D) f32.
    x = x_ref[...]
    x_bf = x.astype(jnp.bfloat16)

    # ---------------- fused QKV projection (scale pre-folded into Q weights) ----------------
    qkv = jnp.dot(x_bf, wqkv_ref[...], preferred_element_type=jnp.float32) + bqkv_ref[...]
    q = qkv[:, :dim].astype(jnp.bfloat16)              # (T, D)   lane-aligned slices
    kt = qkv[:, dim:2 * dim].T.astype(jnp.bfloat16)    # (D, T)   single small XLU transpose
    v = qkv[:, 2 * dim:].astype(jnp.bfloat16)          # (T, D)

    # ---------------- all-head attention via block-diagonal masked matmuls ----------------
    # Column c of the score tile encodes (head, token): head = c // T, token = c % T.
    # 16x replication is done on the MXU with host-precomputed tile-of-identity matrices;
    # the static block-diagonal masks are host bf16 constants (no in-kernel iota/select).
    k_rep = jnp.dot(kt, grep_ref[...], preferred_element_type=jnp.float32)    # (D, cols)
    k_blk = k_rep.astype(jnp.bfloat16) * kmask_ref[...]                       # bf16 block-diag K

    s = jnp.dot(q, k_blk, preferred_element_type=jnp.float32)                 # (T, cols) scaled scores

    # Per-row (all heads of this batch) max shift: constant within every head segment of the
    # row, so the segment-wise softmax is mathematically unchanged.
    m = jnp.max(s, axis=-1, keepdims=True)
    e = jnp.exp(s - m)                                                         # f32 EUP
    e_bf = e.astype(jnp.bfloat16)

    v_rep = jnp.dot(grept_ref[...], v, preferred_element_type=jnp.float32)     # (cols, D)
    v_blk = v_rep.astype(jnp.bfloat16) * vmask_ref[...]                        # bf16 block-diag V

    # Unnormalized context + per-(row, head) partition function (vmask doubles as seg_map);
    # normalize the small (T, D) output instead of the (T, cols) weights. den kept in f32
    # with a tiny-value guard against whole-segment underflow (reviewed corner case).
    ctx = jnp.dot(e_bf, v_blk, preferred_element_type=jnp.float32)             # (T, D)
    den = jnp.dot(e_bf, vmask_ref[...], preferred_element_type=jnp.float32)    # (T, D)
    attn = ctx * pl.reciprocal(jnp.maximum(den, 1e-30), approx=True)

    attn = jnp.dot(attn.astype(jnp.bfloat16), wo_ref[...],
                   preferred_element_type=jnp.float32) + bo_ref[...]

    # residual (encoder dropout = identity at inference) + LayerNorm1 (f32)
    x1 = _layernorm(x + attn, g1_ref[...], be1_ref[...])

    # ---------------------------------- MLP ----------------------------------
    h1 = jnp.dot(x1.astype(jnp.bfloat16), w1_ref[...],
                 preferred_element_type=jnp.float32) + b1_ref[...]
    h1 = _gelu_tanh(h1)                                                        # f32 VPU/EUP math
    mlp = jnp.dot(h1.astype(jnp.bfloat16), w2_ref[...],
                  preferred_element_type=jnp.float32) + b2_ref[...]
    # MLP dropout = identity at inference

    # residual + LayerNorm2
    o_ref[...] = _layernorm(x1 + mlp, g2_ref[...], be2_ref[...]).astype(o_ref.dtype)


@jax.jit
def encoder_forward(x, p):
    B, T, D = x.shape
    H = p["w1"].shape[1]
    head_dim = D // NUM_HEADS
    cols = NUM_HEADS * T
    scale = 1.0 / math.sqrt(head_dim)

    # Host-side packing: fused QKV weight (scale folded into Q), bf16 weights for the MXU.
    wqkv = jnp.concatenate([p["wq"] * scale, p["wk"], p["wv"]], axis=1).astype(jnp.bfloat16)
    bqkv = jnp.concatenate([p["bq"] * scale, p["bk"], p["bv"]], axis=1)   # f32 (added post-matmul)
    wo = p["wo"].astype(jnp.bfloat16)
    w1 = p["w1"].astype(jnp.bfloat16)
    w2 = p["w2"].astype(jnp.bfloat16)

    # Host-precomputed static constants (bf16), constant-folded under jit and DMA'd once.
    c_idx = jnp.arange(cols)
    g_rep = (c_idx[None, :] % T == jnp.arange(T)[:, None]).astype(jnp.bfloat16)      # (T, cols)
    g_rep_t = jnp.transpose(g_rep)                                                    # (cols, T)
    k_mask = (jnp.arange(D)[:, None] // head_dim
              == c_idx[None, :] // T).astype(jnp.bfloat16)                            # (D, cols)
    v_mask = jnp.transpose(k_mask)                                                    # (cols, D)

    kernel = functools.partial(encoder_kernel, dim=D)

    def const_spec(shape):
        nd = len(shape)
        return pl.BlockSpec(shape, lambda b, _n=nd: (0,) * _n)   # resident, DMA'd once

    in_specs = [
        pl.BlockSpec((T, D), lambda b: (b, 0)),       # x: one batch per grid step
        const_spec((D, 3 * D)), const_spec((1, 3 * D)),   # wqkv, bqkv
        const_spec((D, D)), const_spec((1, D)),           # wo, bo
        const_spec((1, D)), const_spec((1, D)),           # g1, beta1
        const_spec((D, H)), const_spec((1, H)),           # w1, b1
        const_spec((H, D)), const_spec((1, D)),           # w2, b2
        const_spec((1, D)), const_spec((1, D)),           # g2, beta2
        const_spec((T, cols)), const_spec((cols, T)),     # g_rep, g_rep_t
        const_spec((D, cols)), const_spec((cols, D)),     # k_mask, v_mask
    ]

    out2d = pl.pallas_call(
        kernel,
        out_shape=jax.ShapeDtypeStruct((B * T, D), jnp.float32),
        grid_spec=pltpu.PrefetchScalarGridSpec(
            num_scalar_prefetch=0,
            grid=(B,),
            in_specs=in_specs,
            out_specs=pl.BlockSpec((T, D), lambda b: (b, 0)),
        ),
        compiler_params=pltpu.CompilerParams(
            dimension_semantics=("parallel",)),   # v7x: batches split across the 2 TCs
    )(x.reshape(B * T, D), wqkv, bqkv, wo, p["bo"],
      p["g1"], p["beta1"], w1, p["b1"], w2, p["b2"], p["g2"], p["beta2"],
      g_rep, g_rep_t, k_mask, v_mask)

    return out2d.reshape(B, T, D)


def init_params(key, dim=DIM, hidden=HIDDEN):
    # Deterministic init mirroring nn.Linear default (uniform(-1/sqrt(fan_in), ...)).
    def lin(k, fan_in, fan_out):
        bound = 1.0 / math.sqrt(fan_in)
        kw, kb = jax.random.split(k)
        w = jax.random.uniform(kw, (fan_in, fan_out), jnp.float32, -bound, bound)
        b = jax.random.uniform(kb, (1, fan_out), jnp.float32, -bound, bound)
        return w, b

    ks = jax.random.split(key, 6)
    wq, bq = lin(ks[0], dim, dim)
    wk, bk = lin(ks[1], dim, dim)
    wv, bv = lin(ks[2], dim, dim)
    wo, bo = lin(ks[3], dim, dim)
    w1, b1 = lin(ks[4], dim, hidden)
    w2, b2 = lin(ks[5], hidden, dim)
    return dict(
        wq=wq, bq=bq, wk=wk, bk=bk, wv=wv, bv=bv, wo=wo, bo=bo,
        w1=w1, b1=b1, w2=w2, b2=b2,
        g1=jnp.ones((1, dim), jnp.float32), beta1=jnp.zeros((1, dim), jnp.float32),
        g2=jnp.ones((1, dim), jnp.float32), beta2=jnp.zeros((1, dim), jnp.float32),
    )


def encoder_reference(x, p):
    # Pure-JAX f32 reference with the exact PyTorch math (erf GELU, per-head softmax).
    B, T, D = x.shape
    hd = D // NUM_HEADS
    q = (x @ p["wq"] + p["bq"]).reshape(B, T, NUM_HEADS, hd).transpose(0, 2, 1, 3)
    k = (x @ p["wk"] + p["bk"]).reshape(B, T, NUM_HEADS, hd).transpose(0, 2, 1, 3)
    v = (x @ p["wv"] + p["bv"]).reshape(B, T, NUM_HEADS, hd).transpose(0, 2, 1, 3)
    s = jnp.einsum("bhqd,bhkd->bhqk", q, k) / math.sqrt(hd)
    w = jax.nn.softmax(s, axis=-1)
    a = jnp.einsum("bhqk,bhkd->bhqd", w, v).transpose(0, 2, 1, 3).reshape(B, T, D)
    a = a @ p["wo"] + p["bo"]
    x1 = _layernorm(x + a, p["g1"], p["beta1"])
    h = jax.nn.gelu(x1 @ p["w1"] + p["b1"], approximate=False)   # exact erf, like torch.nn.GELU
    m = h @ p["w2"] + p["b2"]
    return _layernorm(x1 + m, p["g2"], p["beta2"])


if __name__ == "__main__":
    key = jax.random.PRNGKey(0)
    kx, kp = jax.random.split(key)
    x = jax.random.normal(kx, (BATCH, SEQ, DIM), jnp.float32)
    params = init_params(kp)

    out = jax.block_until_ready(encoder_forward(x, params))
    ref = encoder_reference(x, params)

    assert out.shape == (BATCH, SEQ, DIM)
    # bf16 matmul operands + approx reciprocal + tanh GELU vs exact f32/erf reference.
    assert jnp.max(jnp.abs(out - ref)) < 5e-2, "mismatch vs reference"
    print("KERNEL_OK")
</pallas_src>

<mosaic_0001>
module attributes {stable_mosaic.version = 11 : i64} {
  func.func @encoder_kernel(%arg0: i32, %arg1: memref<16x128xf32, #tpu.memory_space<vmem>>, %arg2: memref<128x384xbf16, #tpu.memory_space<vmem>>, %arg3: memref<1x384xf32, #tpu.memory_space<vmem>>, %arg4: memref<128x128xbf16, #tpu.memory_space<vmem>>, %arg5: memref<1x128xf32, #tpu.memory_space<vmem>>, %arg6: memref<1x128xf32, #tpu.memory_space<vmem>>, %arg7: memref<1x128xf32, #tpu.memory_space<vmem>>, %arg8: memref<128x256xbf16, #tpu.memory_space<vmem>>, %arg9: memref<1x256xf32, #tpu.memory_space<vmem>>, %arg10: memref<256x128xbf16, #tpu.memory_space<vmem>>, %arg11: memref<1x128xf32, #tpu.memory_space<vmem>>, %arg12: memref<1x128xf32, #tpu.memory_space<vmem>>, %arg13: memref<1x128xf32, #tpu.memory_space<vmem>>, %arg14: memref<16x256xbf16, #tpu.memory_space<vmem>>, %arg15: memref<256x16xbf16, #tpu.memory_space<vmem>>, %arg16: memref<128x256xbf16, #tpu.memory_space<vmem>>, %arg17: memref<256x128xbf16, #tpu.memory_space<vmem>>, %arg18: memref<16x128xf32, #tpu.memory_space<vmem>>) attributes {dimension_semantics = [#tpu.dimension_semantics<parallel>], iteration_bounds = array<i64: 2>, scalar_prefetch = 0 : i64, scratch_operands = 0 : i64, tpu.core_type = #tpu.core_type<tc>, window_params = [{transform_indices = @transform_0, window_bounds = array<i64: 16, 128>}, {pipeline_mode = #tpu.pipeline_mode<synchronous>, transform_indices = @transform_1, window_bounds = array<i64: 128, 384>}, {pipeline_mode = #tpu.pipeline_mode<synchronous>, transform_indices = @transform_2, window_bounds = array<i64: 1, 384>}, {pipeline_mode = #tpu.pipeline_mode<synchronous>, transform_indices = @transform_3, window_bounds = array<i64: 128, 128>}, {pipeline_mode = #tpu.pipeline_mode<synchronous>, transform_indices = @transform_4, window_bounds = array<i64: 1, 128>}, {pipeline_mode = #tpu.pipeline_mode<synchronous>, transform_indices = @transform_5, window_bounds = array<i64: 1, 128>}, {pipeline_mode = #tpu.pipeline_mode<synchronous>, transform_indices = @transform_6, window_bounds = array<i64: 1, 128>}, {pipeline_mode = #tpu.pipeline_mode<synchronous>, transform_indices = @transform_7, window_bounds = array<i64: 128, 256>}, {pipeline_mode = #tpu.pipeline_mode<synchronous>, transform_indices = @transform_8, window_bounds = array<i64: 1, 256>}, {pipeline_mode = #tpu.pipeline_mode<synchronous>, transform_indices = @transform_9, window_bounds = array<i64: 256, 128>}, {pipeline_mode = #tpu.pipeline_mode<synchronous>, transform_indices = @transform_10, window_bounds = array<i64: 1, 128>}, {pipeline_mode = #tpu.pipeline_mode<synchronous>, transform_indices = @transform_11, window_bounds = array<i64: 1, 128>}, {pipeline_mode = #tpu.pipeline_mode<synchronous>, transform_indices = @transform_12, window_bounds = array<i64: 1, 128>}, {pipeline_mode = #tpu.pipeline_mode<synchronous>, transform_indices = @transform_13, window_bounds = array<i64: 16, 256>}, {pipeline_mode = #tpu.pipeline_mode<synchronous>, transform_indices = @transform_14, window_bounds = array<i64: 256, 16>}, {pipeline_mode = #tpu.pipeline_mode<synchronous>, transform_indices = @transform_15, window_bounds = array<i64: 128, 256>}, {pipeline_mode = #tpu.pipeline_mode<synchronous>, transform_indices = @transform_16, window_bounds = array<i64: 256, 128>}, {transform_indices = @transform_17, window_bounds = array<i64: 16, 128>}]} {
    %c0 = arith.constant 0 : index
    %c0_0 = arith.constant 0 : index
    %0 = vector.load %arg1[%c0, %c0_0] : memref<16x128xf32, #tpu.memory_space<vmem>>, vector<16x128xf32>
    %1 = arith.truncf %0 : vector<16x128xf32> to vector<16x128xbf16>
    %c0_1 = arith.constant 0 : index
    %c0_2 = arith.constant 0 : index
    %2 = vector.load %arg2[%c0_1, %c0_2] : memref<128x384xbf16, #tpu.memory_space<vmem>>, vector<128x384xbf16>
    %cst = arith.constant dense<0.000000e+00> : vector<16x384xf32>
    %3 = tpu.matmul %1, %2, %cst {dimension_numbers = #tpu.dot_dimension_numbers<[1], [0], [0], [1], [0, 0, 1, 1], [], []>} : vector<16x128xbf16>, vector<128x384xbf16>, vector<16x384xf32> -> vector<16x384xf32>
    %c0_3 = arith.constant 0 : index
    %c0_4 = arith.constant 0 : index
    %4 = vector.load %arg3[%c0_3, %c0_4] : memref<1x384xf32, #tpu.memory_space<vmem>>, vector<1x384xf32>
    %5 = vector.broadcast %4 : vector<1x384xf32> to vector<16x384xf32>
    %6 = arith.addf %3, %5 : vector<16x384xf32>
    %7 = vector.extract_strided_slice %6 {offsets = [0, 0], sizes = [16, 128], strides = [1, 1]} : vector<16x384xf32> to vector<16x128xf32>
    %8 = arith.truncf %7 : vector<16x128xf32> to vector<16x128xbf16>
    %9 = vector.extract_strided_slice %6 {offsets = [0, 128], sizes = [16, 128], strides = [1, 1]} : vector<16x384xf32> to vector<16x128xf32>
    %10 = tpu.transpose %9, [1, 0] : vector<16x128xf32> -> vector<128x16xf32>
    %11 = arith.truncf %10 : vector<128x16xf32> to vector<128x16xbf16>
    %12 = vector.extract_strided_slice %6 {offsets = [0, 256], sizes = [16, 128], strides = [1, 1]} : vector<16x384xf32> to vector<16x128xf32>
    %13 = arith.truncf %12 : vector<16x128xf32> to vector<16x128xbf16>
    %c0_5 = arith.constant 0 : index
    %c0_6 = arith.constant 0 : index
    %14 = vector.load %arg14[%c0_5, %c0_6] : memref<16x256xbf16, #tpu.memory_space<vmem>>, vector<16x256xbf16>
    %cst_7 = arith.constant dense<0.000000e+00> : vector<128x256xf32>
    %15 = tpu.matmul %11, %14, %cst_7 {dimension_numbers = #tpu.dot_dimension_numbers<[1], [0], [0], [1], [0, 0, 1, 1], [], []>} : vector<128x16xbf16>, vector<16x256xbf16>, vector<128x256xf32> -> vector<128x256xf32>
    %16 = arith.truncf %15 : vector<128x256xf32> to vector<128x256xbf16>
    %c0_8 = arith.constant 0 : index
    %c0_9 = arith.constant 0 : index
    %17 = vector.load %arg16[%c0_8, %c0_9] : memref<128x256xbf16, #tpu.memory_space<vmem>>, vector<128x256xbf16>
    %18 = arith.mulf %16, %17 : vector<128x256xbf16>
    %cst_10 = arith.constant dense<0.000000e+00> : vector<16x256xf32>
    %19 = tpu.matmul %8, %18, %cst_10 {dimension_numbers = #tpu.dot_dimension_numbers<[1], [0], [0], [1], [0, 0, 1, 1], [], []>} : vector<16x128xbf16>, vector<128x256xbf16>, vector<16x256xf32> -> vector<16x256xf32>
    %cst_11 = arith.constant dense<0xFF800000> : vector<16xf32>
    %20 = vector.multi_reduction <maximumf>, %19, %cst_11 [1] : vector<16x256xf32> to vector<16xf32>
    %21 = vector.shape_cast %20 : vector<16xf32> to vector<16x1xf32>
    %22 = vector.broadcast %21 : vector<16x1xf32> to vector<16x256xf32>
    %23 = arith.subf %19, %22 : vector<16x256xf32>
    %24 = math.exp %23 : vector<16x256xf32>
    %25 = arith.truncf %24 : vector<16x256xf32> to vector<16x256xbf16>
    %c0_12 = arith.constant 0 : index
    %c0_13 = arith.constant 0 : index
    %26 = vector.load %arg15[%c0_12, %c0_13] : memref<256x16xbf16, #tpu.memory_space<vmem>>, vector<256x16xbf16>
    %cst_14 = arith.constant dense<0.000000e+00> : vector<256x128xf32>
    %27 = tpu.matmul %26, %13, %cst_14 {dimension_numbers = #tpu.dot_dimension_numbers<[1], [0], [0], [1], [0, 0, 1, 1], [], []>} : vector<256x16xbf16>, vector<16x128xbf16>, vector<256x128xf32> -> vector<256x128xf32>
    %28 = arith.truncf %27 : vector<256x128xf32> to vector<256x128xbf16>
    %c0_15 = arith.constant 0 : index
    %c0_16 = arith.constant 0 : index
    %29 = vector.load %arg17[%c0_15, %c0_16] : memref<256x128xbf16, #tpu.memory_space<vmem>>, vector<256x128xbf16>
    %30 = arith.mulf %28, %29 : vector<256x128xbf16>
    %cst_17 = arith.constant dense<0.000000e+00> : vector<16x128xf32>
    %31 = tpu.matmul %25, %30, %cst_17 {dimension_numbers = #tpu.dot_dimension_numbers<[1], [0], [0], [1], [0, 0, 1, 1], [], []>} : vector<16x256xbf16>, vector<256x128xbf16>, vector<16x128xf32> -> vector<16x128xf32>
    %c0_18 = arith.constant 0 : index
    %c0_19 = arith.constant 0 : index
    %32 = vector.load %arg17[%c0_18, %c0_19] : memref<256x128xbf16, #tpu.memory_space<vmem>>, vector<256x128xbf16>
    %cst_20 = arith.constant dense<0.000000e+00> : vector<16x128xf32>
    %33 = tpu.matmul %25, %32, %cst_20 {dimension_numbers = #tpu.dot_dimension_numbers<[1], [0], [0], [1], [0, 0, 1, 1], [], []>} : vector<16x256xbf16>, vector<256x128xbf16>, vector<16x128xf32> -> vector<16x128xf32>
    %cst_21 = arith.constant 1.000000e-30 : f32
    %34 = vector.broadcast %cst_21 : f32 to vector<16x128xf32>
    %35 = arith.maximumf %33, %34 : vector<16x128xf32>
    %36 = tpu.reciprocal %35 {approx = true} : vector<16x128xf32> -> vector<16x128xf32>
    %37 = arith.mulf %31, %36 : vector<16x128xf32>
    %38 = arith.truncf %37 : vector<16x128xf32> to vector<16x128xbf16>
    %c0_22 = arith.constant 0 : index
    %c0_23 = arith.constant 0 : index
    %39 = vector.load %arg4[%c0_22, %c0_23] : memref<128x128xbf16, #tpu.memory_space<vmem>>, vector<128x128xbf16>
    %cst_24 = arith.constant dense<0.000000e+00> : vector<16x128xf32>
    %40 = tpu.matmul %38, %39, %cst_24 {dimension_numbers = #tpu.dot_dimension_numbers<[1], [0], [0], [1], [0, 0, 1, 1], [], []>} : vector<16x128xbf16>, vector<128x128xbf16>, vector<16x128xf32> -> vector<16x128xf32>
    %c0_25 = arith.constant 0 : index
    %c0_26 = arith.constant 0 : index
    %41 = vector.load %arg5[%c0_25, %c0_26] : memref<1x128xf32, #tpu.memory_space<vmem>>, vector<1x128xf32>
    %42 = vector.broadcast %41 : vector<1x128xf32> to vector<16x128xf32>
    %43 = arith.addf %40, %42 : vector<16x128xf32>
    %44 = arith.addf %0, %43 : vector<16x128xf32>
    %c0_27 = arith.constant 0 : index
    %c0_28 = arith.constant 0 : index
    %45 = vector.load %arg6[%c0_27, %c0_28] : memref<1x128xf32, #tpu.memory_space<vmem>>, vector<1x128xf32>
    %c0_29 = arith.constant 0 : index
    %c0_30 = arith.constant 0 : index
    %46 = vector.load %arg7[%c0_29, %c0_30] : memref<1x128xf32, #tpu.memory_space<vmem>>, vector<1x128xf32>
    %cst_31 = arith.constant dense<0.000000e+00> : vector<16xf32>
    %47 = vector.multi_reduction <add>, %44, %cst_31 [1] : vector<16x128xf32> to vector<16xf32>
    %48 = vector.shape_cast %47 : vector<16xf32> to vector<16x1xf32>
    %cst_32 = arith.constant 1.280000e+02 : f32
    %49 = vector.broadcast %cst_32 : f32 to vector<16x1xf32>
    %50 = arith.divf %48, %49 : vector<16x1xf32>
    %51 = vector.broadcast %50 : vector<16x1xf32> to vector<16x128xf32>
    %52 = arith.subf %44, %51 : vector<16x128xf32>
    %53 = arith.mulf %52, %52 : vector<16x128xf32>
    %cst_33 = arith.constant dense<0.000000e+00> : vector<16xf32>
    %54 = vector.multi_reduction <add>, %53, %cst_33 [1] : vector<16x128xf32> to vector<16xf32>
    %55 = vector.shape_cast %54 : vector<16xf32> to vector<16x1xf32>
    %cst_34 = arith.constant 1.280000e+02 : f32
    %56 = vector.broadcast %cst_34 : f32 to vector<16x1xf32>
    %57 = arith.divf %55, %56 : vector<16x1xf32>
    %58 = vector.broadcast %50 : vector<16x1xf32> to vector<16x128xf32>
    %59 = arith.subf %44, %58 : vector<16x128xf32>
    %cst_35 = arith.constant 9.99999996E-13 : f32
    %60 = vector.broadcast %cst_35 : f32 to vector<16x1xf32>
    %61 = arith.addf %57, %60 : vector<16x1xf32>
    %62 = math.rsqrt %61 : vector<16x1xf32>
    %63 = vector.broadcast %62 : vector<16x1xf32> to vector<16x128xf32>
    %64 = arith.mulf %59, %63 : vector<16x128xf32>
    %65 = vector.broadcast %45 : vector<1x128xf32> to vector<16x128xf32>
    %66 = arith.mulf %64, %65 : vector<16x128xf32>
    %67 = vector.broadcast %46 : vector<1x128xf32> to vector<16x128xf32>
    %68 = arith.addf %66, %67 : vector<16x128xf32>
    %69 = arith.truncf %68 : vector<16x128xf32> to vector<16x128xbf16>
    %c0_36 = arith.constant 0 : index
    %c0_37 = arith.constant 0 : index
    %70 = vector.load %arg8[%c0_36, %c0_37] : memref<128x256xbf16, #tpu.memory_space<vmem>>, vector<128x256xbf16>
    %cst_38 = arith.constant dense<0.000000e+00> : vector<16x256xf32>
    %71 = tpu.matmul %69, %70, %cst_38 {dimension_numbers = #tpu.dot_dimension_numbers<[1], [0], [0], [1], [0, 0, 1, 1], [], []>} : vector<16x128xbf16>, vector<128x256xbf16>, vector<16x256xf32> -> vector<16x256xf32>
    %c0_39 = arith.constant 0 : index
    %c0_40 = arith.constant 0 : index
    %72 = vector.load %arg9[%c0_39, %c0_40] : memref<1x256xf32, #tpu.memory_space<vmem>>, vector<1x256xf32>
    %73 = vector.broadcast %72 : vector<1x256xf32> to vector<16x256xf32>
    %74 = arith.addf %71, %73 : vector<16x256xf32>
    %cst_41 = arith.constant 5.000000e-01 : f32
    %75 = vector.broadcast %cst_41 : f32 to vector<16x256xf32>
    %76 = arith.mulf %75, %74 : vector<16x256xf32>
    %cst_42 = arith.constant 4.471500e-02 : f32
    %77 = vector.broadcast %cst_42 : f32 to vector<16x256xf32>
    %78 = arith.mulf %77, %74 : vector<16x256xf32>
    %79 = arith.mulf %78, %74 : vector<16x256xf32>
    %80 = arith.mulf %79, %74 : vector<16x256xf32>
    %81 = arith.addf %74, %80 : vector<16x256xf32>
    %cst_43 = arith.constant 0.797884583 : f32
    %82 = vector.broadcast %cst_43 : f32 to vector<16x256xf32>
    %83 = arith.mulf %82, %81 : vector<16x256xf32>
    %84 = math.tanh %83 : vector<16x256xf32>
    %cst_44 = arith.constant 1.000000e+00 : f32
    %85 = vector.broadcast %cst_44 : f32 to vector<16x256xf32>
    %86 = arith.addf %85, %84 : vector<16x256xf32>
    %87 = arith.mulf %76, %86 : vector<16x256xf32>
    %88 = arith.truncf %87 : vector<16x256xf32> to vector<16x256xbf16>
    %c0_45 = arith.constant 0 : index
    %c0_46 = arith.constant 0 : index
    %89 = vector.load %arg10[%c0_45, %c0_46] : memref<256x128xbf16, #tpu.memory_space<vmem>>, vector<256x128xbf16>
    %cst_47 = arith.constant dense<0.000000e+00> : vector<16x128xf32>
    %90 = tpu.matmul %88, %89, %cst_47 {dimension_numbers = #tpu.dot_dimension_numbers<[1], [0], [0], [1], [0, 0, 1, 1], [], []>} : vector<16x256xbf16>, vector<256x128xbf16>, vector<16x128xf32> -> vector<16x128xf32>
    %c0_48 = arith.constant 0 : index
    %c0_49 = arith.constant 0 : index
    %91 = vector.load %arg11[%c0_48, %c0_49] : memref<1x128xf32, #tpu.memory_space<vmem>>, vector<1x128xf32>
    %92 = vector.broadcast %91 : vector<1x128xf32> to vector<16x128xf32>
    %93 = arith.addf %90, %92 : vector<16x128xf32>
    %94 = arith.addf %68, %93 : vector<16x128xf32>
    %c0_50 = arith.constant 0 : index
    %c0_51 = arith.constant 0 : index
    %95 = vector.load %arg12[%c0_50, %c0_51] : memref<1x128xf32, #tpu.memory_space<vmem>>, vector<1x128xf32>
    %c0_52 = arith.constant 0 : index
    %c0_53 = arith.constant 0 : index
    %96 = vector.load %arg13[%c0_52, %c0_53] : memref<1x128xf32, #tpu.memory_space<vmem>>, vector<1x128xf32>
    %cst_54 = arith.constant dense<0.000000e+00> : vector<16xf32>
    %97 = vector.multi_reduction <add>, %94, %cst_54 [1] : vector<16x128xf32> to vector<16xf32>
    %98 = vector.shape_cast %97 : vector<16xf32> to vector<16x1xf32>
    %cst_55 = arith.constant 1.280000e+02 : f32
    %99 = vector.broadcast %cst_55 : f32 to vector<16x1xf32>
    %100 = arith.divf %98, %99 : vector<16x1xf32>
    %101 = vector.broadcast %100 : vector<16x1xf32> to vector<16x128xf32>
    %102 = arith.subf %94, %101 : vector<16x128xf32>
    %103 = arith.mulf %102, %102 : vector<16x128xf32>
    %cst_56 = arith.constant dense<0.000000e+00> : vector<16xf32>
    %104 = vector.multi_reduction <add>, %103, %cst_56 [1] : vector<16x128xf32> to vector<16xf32>
    %105 = vector.shape_cast %104 : vector<16xf32> to vector<16x1xf32>
    %cst_57 = arith.constant 1.280000e+02 : f32
    %106 = vector.broadcast %cst_57 : f32 to vector<16x1xf32>
    %107 = arith.divf %105, %106 : vector<16x1xf32>
    %108 = vector.broadcast %100 : vector<16x1xf32> to vector<16x128xf32>
    %109 = arith.subf %94, %108 : vector<16x128xf32>
    %cst_58 = arith.constant 9.99999996E-13 : f32
    %110 = vector.broadcast %cst_58 : f32 to vector<16x1xf32>
    %111 = arith.addf %107, %110 : vector<16x1xf32>
    %112 = math.rsqrt %111 : vector<16x1xf32>
    %113 = vector.broadcast %112 : vector<16x1xf32> to vector<16x128xf32>
    %114 = arith.mulf %109, %113 : vector<16x128xf32>
    %115 = vector.broadcast %95 : vector<1x128xf32> to vector<16x128xf32>
    %116 = arith.mulf %114, %115 : vector<16x128xf32>
    %117 = vector.broadcast %96 : vector<1x128xf32> to vector<16x128xf32>
    %118 = arith.addf %116, %117 : vector<16x128xf32>
    %c0_59 = arith.constant 0 : index
    %c0_60 = arith.constant 0 : index
    %119 = vector.load %arg18[%c0_59, %c0_60] : memref<16x128xf32, #tpu.memory_space<vmem>>, vector<16x128xf32>
    tpu.vector_store %arg18[%c0_59, %c0_60], %118 {strides = array<i32>} : memref<16x128xf32, #tpu.memory_space<vmem>>, vector<16x128xf32>,
    return
  }
  func.func @transform_0(%arg0: i32) -> (i32, i32) {
    %c0_i32 = arith.constant 0 : i32
    %c0_i32_0 = arith.constant 0 : i32
    return %arg0, %c0_i32 : i32, i32
  }
  func.func @transform_1(%arg0: i32) -> (i32, i32) {
    %c0_i32 = arith.constant 0 : i32
    %c0_i32_0 = arith.constant 0 : i32
    %c0_i32_1 = arith.constant 0 : i32
    return %c0_i32, %c0_i32_0 : i32, i32
  }
  func.func @transform_2(%arg0: i32) -> (i32, i32) {
    %c0_i32 = arith.constant 0 : i32
    %c0_i32_0 = arith.constant 0 : i32
    %c0_i32_1 = arith.constant 0 : i32
    return %c0_i32, %c0_i32_0 : i32, i32
  }
  func.func @transform_3(%arg0: i32) -> (i32, i32) {
    %c0_i32 = arith.constant 0 : i32
    %c0_i32_0 = arith.constant 0 : i32
    %c0_i32_1 = arith.constant 0 : i32
    return %c0_i32, %c0_i32_0 : i32, i32
  }
  func.func @transform_4(%arg0: i32) -> (i32, i32) {
    %c0_i32 = arith.constant 0 : i32
    %c0_i32_0 = arith.constant 0 : i32
    %c0_i32_1 = arith.constant 0 : i32
    return %c0_i32, %c0_i32_0 : i32, i32
  }
  func.func @transform_5(%arg0: i32) -> (i32, i32) {
    %c0_i32 = arith.constant 0 : i32
    %c0_i32_0 = arith.constant 0 : i32
    %c0_i32_1 = arith.constant 0 : i32
    return %c0_i32, %c0_i32_0 : i32, i32
  }
  func.func @transform_6(%arg0: i32) -> (i32, i32) {
    %c0_i32 = arith.constant 0 : i32
    %c0_i32_0 = arith.constant 0 : i32
    %c0_i32_1 = arith.constant 0 : i32
    return %c0_i32, %c0_i32_0 : i32, i32
  }
  func.func @transform_7(%arg0: i32) -> (i32, i32) {
    %c0_i32 = arith.constant 0 : i32
    %c0_i32_0 = arith.constant 0 : i32
    %c0_i32_1 = arith.constant 0 : i32
    return %c0_i32, %c0_i32_0 : i32, i32
  }
  func.func @transform_8(%arg0: i32) -> (i32, i32) {
    %c0_i32 = arith.constant 0 : i32
    %c0_i32_0 = arith.constant 0 : i32
    %c0_i32_1 = arith.constant 0 : i32
    return %c0_i32, %c0_i32_0 : i32, i32
  }
  func.func @transform_9(%arg0: i32) -> (i32, i32) {
    %c0_i32 = arith.constant 0 : i32
    %c0_i32_0 = arith.constant 0 : i32
    %c0_i32_1 = arith.constant 0 : i32
    return %c0_i32, %c0_i32_0 : i32, i32
  }
  func.func @transform_10(%arg0: i32) -> (i32, i32) {
    %c0_i32 = arith.constant 0 : i32
    %c0_i32_0 = arith.constant 0 : i32
    %c0_i32_1 = arith.constant 0 : i32
    return %c0_i32, %c0_i32_0 : i32, i32
  }
  func.func @transform_11(%arg0: i32) -> (i32, i32) {
    %c0_i32 = arith.constant 0 : i32
    %c0_i32_0 = arith.constant 0 : i32
    %c0_i32_1 = arith.constant 0 : i32
    return %c0_i32, %c0_i32_0 : i32, i32
  }
  func.func @transform_12(%arg0: i32) -> (i32, i32) {
    %c0_i32 = arith.constant 0 : i32
    %c0_i32_0 = arith.constant 0 : i32
    %c0_i32_1 = arith.constant 0 : i32
    return %c0_i32, %c0_i32_0 : i32, i32
  }
  func.func @transform_13(%arg0: i32) -> (i32, i32) {
    %c0_i32 = arith.constant 0 : i32
    %c0_i32_0 = arith.constant 0 : i32
    %c0_i32_1 = arith.constant 0 : i32
    return %c0_i32, %c0_i32_0 : i32, i32
  }
  func.func @transform_14(%arg0: i32) -> (i32, i32) {
    %c0_i32 = arith.constant 0 : i32
    %c0_i32_0 = arith.constant 0 : i32
    %c0_i32_1 = arith.constant 0 : i32
    return %c0_i32, %c0_i32_0 : i32, i32
  }
  func.func @transform_15(%arg0: i32) -> (i32, i32) {
    %c0_i32 = arith.constant 0 : i32
    %c0_i32_0 = arith.constant 0 : i32
    %c0_i32_1 = arith.constant 0 : i32
    return %c0_i32, %c0_i32_0 : i32, i32
  }
  func.func @transform_16(%arg0: i32) -> (i32, i32) {
    %c0_i32 = arith.constant 0 : i32
    %c0_i32_0 = arith.constant 0 : i32
    %c0_i32_1 = arith.constant 0 : i32
    return %c0_i32, %c0_i32_0 : i32, i32
  }
  func.func @transform_17(%arg0: i32) -> (i32, i32) {
    %c0_i32 = arith.constant 0 : i32
    %c0_i32_0 = arith.constant 0 : i32
    return %arg0, %c0_i32 : i32, i32
  }
}

</mosaic_0001>

<llo_original>
// kernel: encoder_forward.1
$region0: #{encoder_forward.1}
  #allocation0 [shape = 'u32[]', space=smem, size = 0x4, offset = 0x4, fixed_abs, tag = 'smem constant byte address 0x4 - core index']
  #allocation1 [shape = 'u32[144,128]{1,0:T(1,128)}', space=vmem, size = 0x12000, scoped, tag = 'internal scratch']
  %s0 = inlined_call_operand.vmem [shape: f32[32,128], index: 0, kind: input, shape index: {}]
  %s1 = inlined_call_operand.vmem [shape: bf16[128,384], index: 1, kind: input, shape index: {}]
  %s2 = inlined_call_operand.vmem [shape: f32[1,384], index: 2, kind: input, shape index: {}]
  %s3 = inlined_call_operand.vmem [shape: bf16[128,128], index: 3, kind: input, shape index: {}]
  %s4 = inlined_call_operand.vmem [shape: f32[1,128], index: 4, kind: input, shape index: {}]
  %s5 = inlined_call_operand.vmem [shape: f32[1,128], index: 5, kind: input, shape index: {}]
  %s6 = inlined_call_operand.vmem [shape: f32[1,128], index: 6, kind: input, shape index: {}]
  %s7 = inlined_call_operand.vmem [shape: bf16[128,256], index: 7, kind: input, shape index: {}]
  %s8 = inlined_call_operand.vmem [shape: f32[1,256], index: 8, kind: input, shape index: {}]
  %s9 = inlined_call_operand.vmem [shape: bf16[256,128], index: 9, kind: input, shape index: {}]
  %s10 = inlined_call_operand.vmem [shape: f32[1,128], index: 10, kind: input, shape index: {}]
  %s11 = inlined_call_operand.vmem [shape: f32[1,128], index: 11, kind: input, shape index: {}]
  %s12 = inlined_call_operand.vmem [shape: f32[1,128], index: 12, kind: input, shape index: {}]
  %s13 = inlined_call_operand.vmem [shape: bf16[16,256], index: 13, kind: input, shape index: {}]
  %s14 = inlined_call_operand.vmem [shape: bf16[256,16], index: 14, kind: input, shape index: {}]
  %s15 = inlined_call_operand.vmem [shape: bf16[128,256], index: 15, kind: input, shape index: {}]
  %s16 = inlined_call_operand.vmem [shape: bf16[256,128], index: 16, kind: input, shape index: {}]
  %s17 = inlined_call_operand.hbm [shape: f32[32,128], index: 17, kind: output, shape index: {}]
  %s18 = sld [smem:[#allocation0]]
  $region101: #{encoder_forward.1} parent=0
    _
  %s20 = ssub.s32 1, %s18
  %s21 = scalar_select 0, %s20, %s18
  $region1: #{encoder_forward.1} parent=0
    #allocation2 [shape = 'u8[16384]{0}', space=vmem, size = 0x4000, scoped, tag = 'output window, operand 0']
    #allocation3 [shape = 's32[2]{0}', space=sflag, size = 0x8, scoped, tag = 'scoped memory for encoder_forward.1']
    %22 = vsyncpa [#allocation3], 0
    %s23 = scalar_lea.sflag [#allocation3], 1
    %24 = vsyncpa %s23, 0
    loop: start=0, step=1, limit=4
    $region2: #{encoder_forward.1} parent=1 // loop_pre_header
      _
    $region3: #{encoder_forward.1} parent=1 // loop_header
      %s26 = sphi 0, %s30
      %p27 = scmp.ge.s32.totalorder %s26, 4
      %s36 = sphi 0, %s38
      %s39 = sphi 0, %s36
      %s40 = sphi 0, %s39
      %s56 = sphi 0, %s40
      %s60 = sphi 0, %s60
      %s62 = sphi 0, %s60
      %s63 = sphi 0, %s62
      %s77 = sphi 0, %s63
      %s81 = sphi 0, %s81
      %s83 = sphi 0, %s81
      %s84 = sphi 0, %s83
      %s98 = sphi 0, %s84
      %s102 = sphi 0, %s102
      %s104 = sphi 0, %s102
      %s105 = sphi 0, %s104
      %s119 = sphi 0, %s105
      %s123 = sphi 0, %s123
      %s125 = sphi 0, %s123
      %s126 = sphi 0, %s125
      %s140 = sphi 0, %s126
      %s144 = sphi 0, %s144
      %s146 = sphi 0, %s144
      %s147 = sphi 0, %s146
      %s161 = sphi 0, %s147
      %s165 = sphi 0, %s165
      %s167 = sphi 0, %s165
      %s168 = sphi 0, %s167
      %s182 = sphi 0, %s168
      %s186 = sphi 0, %s186
      %s188 = sphi 0, %s186
      %s189 = sphi 0, %s188
      %s203 = sphi 0, %s189
      %s207 = sphi 0, %s207
      %s209 = sphi 0, %s207
      %s210 = sphi 0, %s209
      %s224 = sphi 0, %s210
      %s228 = sphi 0, %s228
      %s230 = sphi 0, %s228
      %s231 = sphi 0, %s230
      %s245 = sphi 0, %s231
      %s249 = sphi 0, %s249
      %s251 = sphi 0, %s249
      %s252 = sphi 0, %s251
      %s266 = sphi 0, %s252
      %s270 = sphi 0, %s270
      %s272 = sphi 0, %s270
      %s273 = sphi 0, %s272
      %s287 = sphi 0, %s273
      %s291 = sphi 0, %s291
      %s293 = sphi 0, %s291
      %s294 = sphi 0, %s293
      %s308 = sphi 0, %s294
      %s312 = sphi 0, %s312
      %s314 = sphi 0, %s312
      %s315 = sphi 0, %s314
      %s329 = sphi 0, %s315
      %s333 = sphi 0, %s333
      %s335 = sphi 0, %s333
      %s336 = sphi 0, %s335
      %s350 = sphi 0, %s336
      %s354 = sphi 0, %s354
      %s356 = sphi 0, %s354
      %s357 = sphi 0, %s356
      %s371 = sphi 0, %s357
      %s375 = sphi 0, %s375
      %s377 = sphi 0, %s375
      %s378 = sphi 0, %s377
      %s392 = sphi 0, %s378
      %s398 = sphi 0, %s400
      %s401 = sphi 0, %s398
      %s402 = sphi 0, %s401
      %s418 = sphi 0, %s402
    $region4: #{encoder_forward.1} parent=1 // loop_header_branch
      %29 = sbr.rel (%p27) target = $region8
    $region5: #{encoder_forward.1} parent=1 // loop_body
      %s31 = ssub.s32 %s26, 1
      %s32 = ssub.s32 %s26, 2
      %s33 = sadd.s32 %s26, 1
      %s34 = ssub.s32 %s26, %s33
      %p35 = scmp.eq.s32.totalorder %s34, 0
      %s37 = sadd.s32 %s36, 1
      %s38 = scalar_select %p35, %s36, %s37
      %p41 = pneg %p35
      %p42 = scmp.eq.s32.totalorder %s26, 1
      %p43 = por %p41, %p42
      %p44 = scmp.ne.s32.totalorder %s36, %s39
      %p45 = scmp.eq.s32.totalorder %s26, 0
      %p46 = por %p44, %p45
      %p47 = scmp.ne.s32.totalorder %s36, %s39
      %p48 = scmp.eq.s32.totalorder %s31, 1
      %p49 = por %p47, %p48
      %p50 = scmp.ne.s32.totalorder %s39, %s40
      %p51 = scmp.eq.s32.totalorder %s31, 0
      %p52 = por %p50, %p51
      %p53 = scmp.ne.s32.totalorder %s39, %s40
      %p54 = scmp.eq.s32.totalorder %s32, 1
      %p55 = por %p53, %p54
      %p57 = scmp.ne.s32.totalorder %s40, %s56
      %p58 = scmp.eq.s32.totalorder %s32, 0
      %p59 = por %p57, %p58
      %s61 = sadd.s32 %s60, 1
      %p64 = scmp.eq.s32.totalorder %s26, 1
      %p65 = scmp.ne.s32.totalorder %s60, %s62
      %p66 = scmp.eq.s32.totalorder %s26, 0
      %p67 = por %p65, %p66
      %p68 = scmp.ne.s32.totalorder %s60, %s62
      %p69 = scmp.eq.s32.totalorder %s31, 1
      %p70 = por %p68, %p69
      %p71 = scmp.ne.s32.totalorder %s62, %s63
      %p72 = scmp.eq.s32.totalorder %s31, 0
      %p73 = por %p71, %p72
      %p74 = scmp.ne.s32.totalorder %s62, %s63
      %p75 = scmp.eq.s32.totalorder %s32, 1
      %p76 = por %p74, %p75
      %p78 = scmp.ne.s32.totalorder %s63, %s77
      %p79 = scmp.eq.s32.totalorder %s32, 0
      %p80 = por %p78, %p79
      %s82 = sadd.s32 %s81, 1
      %p85 = scmp.eq.s32.totalorder %s26, 1
      %p86 = scmp.ne.s32.totalorder %s81, %s83
      %p87 = scmp.eq.s32.totalorder %s26, 0
      %p88 = por %p86, %p87
      %p89 = scmp.ne.s32.totalorder %s81, %s83
      %p90 = scmp.eq.s32.totalorder %s31, 1
      %p91 = por %p89, %p90
      %p92 = scmp.ne.s32.totalorder %s83, %s84
      %p93 = scmp.eq.s32.totalorder %s31, 0
      %p94 = por %p92, %p93
      %p95 = scmp.ne.s32.totalorder %s83, %s84
      %p96 = scmp.eq.s32.totalorder %s32, 1
      %p97 = por %p95, %p96
      %p99 = scmp.ne.s32.totalorder %s84, %s98
      %p100 = scmp.eq.s32.totalorder %s32, 0
      %p101 = por %p99, %p100
      %s103 = sadd.s32 %s102, 1
      %p106 = scmp.eq.s32.totalorder %s26, 1
      %p107 = scmp.ne.s32.totalorder %s102, %s104
      %p108 = scmp.eq.s32.totalorder %s26, 0
      %p109 = por %p107, %p108
      %p110 = scmp.ne.s32.totalorder %s102, %s104
      %p111 = scmp.eq.s32.totalorder %s31, 1
      %p112 = por %p110, %p111
      %p113 = scmp.ne.s32.totalorder %s104, %s105
      %p114 = scmp.eq.s32.totalorder %s31, 0
      %p115 = por %p113, %p114
      %p116 = scmp.ne.s32.totalorder %s104, %s105
      %p117 = scmp.eq.s32.totalorder %s32, 1
      %p118 = por %p116, %p117
      %p120 = scmp.ne.s32.totalorder %s105, %s119
      %p121 = scmp.eq.s32.totalorder %s32, 0
      %p122 = por %p120, %p121
      %s124 = sadd.s32 %s123, 1
      %p127 = scmp.eq.s32.totalorder %s26, 1
      %p128 = scmp.ne.s32.totalorder %s123, %s125
      %p129 = scmp.eq.s32.totalorder %s26, 0
      %p130 = por %p128, %p129
      %p131 = scmp.ne.s32.totalorder %s123, %s125
      %p132 = scmp.eq.s32.totalorder %s31, 1
      %p133 = por %p131, %p132
      %p134 = scmp.ne.s32.totalorder %s125, %s126
      %p135 = scmp.eq.s32.totalorder %s31, 0
      %p136 = por %p134, %p135
      %p137 = scmp.ne.s32.totalorder %s125, %s126
      %p138 = scmp.eq.s32.totalorder %s32, 1
      %p139 = por %p137, %p138
      %p141 = scmp.ne.s32.totalorder %s126, %s140
      %p142 = scmp.eq.s32.totalorder %s32, 0
      %p143 = por %p141, %p142
      %s145 = sadd.s32 %s144, 1
      %p148 = scmp.eq.s32.totalorder %s26, 1
      %p149 = scmp.ne.s32.totalorder %s144, %s146
      %p150 = scmp.eq.s32.totalorder %s26, 0
      %p151 = por %p149, %p150
      %p152 = scmp.ne.s32.totalorder %s144, %s146
      %p153 = scmp.eq.s32.totalorder %s31, 1
      %p154 = por %p152, %p153
      %p155 = scmp.ne.s32.totalorder %s146, %s147
      %p156 = scmp.eq.s32.totalorder %s31, 0
      %p157 = por %p155, %p156
      %p158 = scmp.ne.s32.totalorder %s146, %s147
      %p159 = scmp.eq.s32.totalorder %s32, 1
      %p160 = por %p158, %p159
      %p162 = scmp.ne.s32.totalorder %s147, %s161
      %p163 = scmp.eq.s32.totalorder %s32, 0
      %p164 = por %p162, %p163
      %s166 = sadd.s32 %s165, 1
      %p169 = scmp.eq.s32.totalorder %s26, 1
      %p170 = scmp.ne.s32.totalorder %s165, %s167
      %p171 = scmp.eq.s32.totalorder %s26, 0
      %p172 = por %p170, %p171
      %p173 = scmp.ne.s32.totalorder %s165, %s167
      %p174 = scmp.eq.s32.totalorder %s31, 1
      %p175 = por %p173, %p174
      %p176 = scmp.ne.s32.totalorder %s167, %s168
      %p177 = scmp.eq.s32.totalorder %s31, 0
      %p178 = por %p176, %p177
      %p179 = scmp.ne.s32.totalorder %s167, %s168
      %p180 = scmp.eq.s32.totalorder %s32, 1
      %p181 = por %p179, %p180
      %p183 = scmp.ne.s32.totalorder %s168, %s182
      %p184 = scmp.eq.s32.totalorder %s32, 0
      %p185 = por %p183, %p184
      %s187 = sadd.s32 %s186, 1
      %p190 = scmp.eq.s32.totalorder %s26, 1
      %p191 = scmp.ne.s32.totalorder %s186, %s188
      %p192 = scmp.eq.s32.totalorder %s26, 0
      %p193 = por %p191, %p192
      %p194 = scmp.ne.s32.totalorder %s186, %s188
      %p195 = scmp.eq.s32.totalorder %s31, 1
      %p196 = por %p194, %p195
      %p197 = scmp.ne.s32.totalorder %s188, %s189
      %p198 = scmp.eq.s32.totalorder %s31, 0
      %p199 = por %p197, %p198
      %p200 = scmp.ne.s32.totalorder %s188, %s189
      %p201 = scmp.eq.s32.totalorder %s32, 1
      %p202 = por %p200, %p201
      %p204 = scmp.ne.s32.totalorder %s189, %s203
      %p205 = scmp.eq.s32.totalorder %s32, 0
      %p206 = por %p204, %p205
      %s208 = sadd.s32 %s207, 1
      %p211 = scmp.eq.s32.totalorder %s26, 1
      %p212 = scmp.ne.s32.totalorder %s207, %s209
      %p213 = scmp.eq.s32.totalorder %s26, 0
      %p214 = por %p212, %p213
      %p215 = scmp.ne.s32.totalorder %s207, %s209
      %p216 = scmp.eq.s32.totalorder %s31, 1
      %p217 = por %p215, %p216
      %p218 = scmp.ne.s32.totalorder %s209, %s210
      %p219 = scmp.eq.s32.totalorder %s31, 0
      %p220 = por %p218, %p219
      %p221 = scmp.ne.s32.totalorder %s209, %s210
      %p222 = scmp.eq.s32.totalorder %s32, 1
      %p223 = por %p221, %p222
      %p225 = scmp.ne.s32.totalorder %s210, %s224
      %p226 = scmp.eq.s32.totalorder %s32, 0
      %p227 = por %p225, %p226
      %s229 = sadd.s32 %s228, 1
      %p232 = scmp.eq.s32.totalorder %s26, 1
      %p233 = scmp.ne.s32.totalorder %s228, %s230
      %p234 = scmp.eq.s32.totalorder %s26, 0
      %p235 = por %p233, %p234
      %p236 = scmp.ne.s32.totalorder %s228, %s230
      %p237 = scmp.eq.s32.totalorder %s31, 1
      %p238 = por %p236, %p237
      %p239 = scmp.ne.s32.totalorder %s230, %s231
      %p240 = scmp.eq.s32.totalorder %s31, 0
      %p241 = por %p239, %p240
      %p242 = scmp.ne.s32.totalorder %s230, %s231
      %p243 = scmp.eq.s32.totalorder %s32, 1
      %p244 = por %p242, %p243
      %p246 = scmp.ne.s32.totalorder %s231, %s245
      %p247 = scmp.eq.s32.totalorder %s32, 0
      %p248 = por %p246, %p247
      %s250 = sadd.s32 %s249, 1
      %p253 = scmp.eq.s32.totalorder %s26, 1
      %p254 = scmp.ne.s32.totalorder %s249, %s251
      %p255 = scmp.eq.s32.totalorder %s26, 0
      %p256 = por %p254, %p255
      %p257 = scmp.ne.s32.totalorder %s249, %s251
      %p258 = scmp.eq.s32.totalorder %s31, 1
      %p259 = por %p257, %p258
      %p260 = scmp.ne.s32.totalorder %s251, %s252
      %p261 = scmp.eq.s32.totalorder %s31, 0
      %p262 = por %p260, %p261
      %p263 = scmp.ne.s32.totalorder %s251, %s252
      %p264 = scmp.eq.s32.totalorder %s32, 1
      %p265 = por %p263, %p264
      %p267 = scmp.ne.s32.totalorder %s252, %s266
      %p268 = scmp.eq.s32.totalorder %s32, 0
      %p269 = por %p267, %p268
      %s271 = sadd.s32 %s270, 1
      %p274 = scmp.eq.s32.totalorder %s26, 1
      %p275 = scmp.ne.s32.totalorder %s270, %s272
      %p276 = scmp.eq.s32.totalorder %s26, 0
      %p277 = por %p275, %p276
      %p278 = scmp.ne.s32.totalorder %s270, %s272
      %p279 = scmp.eq.s32.totalorder %s31, 1
      %p280 = por %p278, %p279
      %p281 = scmp.ne.s32.totalorder %s272, %s273
      %p282 = scmp.eq.s32.totalorder %s31, 0
      %p283 = por %p281, %p282
      %p284 = scmp.ne.s32.totalorder %s272, %s273
      %p285 = scmp.eq.s32.totalorder %s32, 1
      %p286 = por %p284, %p285
      %p288 = scmp.ne.s32.totalorder %s273, %s287
      %p289 = scmp.eq.s32.totalorder %s32, 0
      %p290 = por %p288, %p289
      %s292 = sadd.s32 %s291, 1
      %p295 = scmp.eq.s32.totalorder %s26, 1
      %p296 = scmp.ne.s32.totalorder %s291, %s293
      %p297 = scmp.eq.s32.totalorder %s26, 0
      %p298 = por %p296, %p297
      %p299 = scmp.ne.s32.totalorder %s291, %s293
      %p300 = scmp.eq.s32.totalorder %s31, 1
      %p301 = por %p299, %p300
      %p302 = scmp.ne.s32.totalorder %s293, %s294
      %p303 = scmp.eq.s32.totalorder %s31, 0
      %p304 = por %p302, %p303
      %p305 = scmp.ne.s32.totalorder %s293, %s294
      %p306 = scmp.eq.s32.totalorder %s32, 1
      %p307 = por %p305, %p306
      %p309 = scmp.ne.s32.totalorder %s294, %s308
      %p310 = scmp.eq.s32.totalorder %s32, 0
      %p311 = por %p309, %p310
      %s313 = sadd.s32 %s312, 1
      %p316 = scmp.eq.s32.totalorder %s26, 1
      %p317 = scmp.ne.s32.totalorder %s312, %s314
      %p318 = scmp.eq.s32.totalorder %s26, 0
      %p319 = por %p317, %p318
      %p320 = scmp.ne.s32.totalorder %s312, %s314
      %p321 = scmp.eq.s32.totalorder %s31, 1
      %p322 = por %p320, %p321
      %p323 = scmp.ne.s32.totalorder %s314, %s315
      %p324 = scmp.eq.s32.totalorder %s31, 0
      %p325 = por %p323, %p324
      %p326 = scmp.ne.s32.totalorder %s314, %s315
      %p327 = scmp.eq.s32.totalorder %s32, 1
      %p328 = por %p326, %p327
      %p330 = scmp.ne.s32.totalorder %s315, %s329
      %p331 = scmp.eq.s32.totalorder %s32, 0
      %p332 = por %p330, %p331
      %s334 = sadd.s32 %s333, 1
      %p337 = scmp.eq.s32.totalorder %s26, 1
      %p338 = scmp.ne.s32.totalorder %s333, %s335
      %p339 = scmp.eq.s32.totalorder %s26, 0
      %p340 = por %p338, %p339
      %p341 = scmp.ne.s32.totalorder %s333, %s335
      %p342 = scmp.eq.s32.totalorder %s31, 1
      %p343 = por %p341, %p342
      %p344 = scmp.ne.s32.totalorder %s335, %s336
      %p345 = scmp.eq.s32.totalorder %s31, 0
      %p346 = por %p344, %p345
      %p347 = scmp.ne.s32.totalorder %s335, %s336
      %p348 = scmp.eq.s32.totalorder %s32, 1
      %p349 = por %p347, %p348
      %p351 = scmp.ne.s32.totalorder %s336, %s350
      %p352 = scmp.eq.s32.totalorder %s32, 0
      %p353 = por %p351, %p352
      %s355 = sadd.s32 %s354, 1
      %p358 = scmp.eq.s32.totalorder %s26, 1
      %p359 = scmp.ne.s32.totalorder %s354, %s356
      %p360 = scmp.eq.s32.totalorder %s26, 0
      %p361 = por %p359, %p360
      %p362 = scmp.ne.s32.totalorder %s354, %s356
      %p363 = scmp.eq.s32.totalorder %s31, 1
      %p364 = por %p362, %p363
      %p365 = scmp.ne.s32.totalorder %s356, %s357
      %p366 = scmp.eq.s32.totalorder %s31, 0
      %p367 = por %p365, %p366
      %p368 = scmp.ne.s32.totalorder %s356, %s357
      %p369 = scmp.eq.s32.totalorder %s32, 1
      %p370 = por %p368, %p369
      %p372 = scmp.ne.s32.totalorder %s357, %s371
      %p373 = scmp.eq.s32.totalorder %s32, 0
      %p374 = por %p372, %p373
      %s376 = sadd.s32 %s375, 1
      %p379 = scmp.eq.s32.totalorder %s26, 1
      %p380 = scmp.ne.s32.totalorder %s375, %s377
      %p381 = scmp.eq.s32.totalorder %s26, 0
      %p382 = por %p380, %p381
      %p383 = scmp.ne.s32.totalorder %s375, %s377
      %p384 = scmp.eq.s32.totalorder %s31, 1
      %p385 = por %p383, %p384
      %p386 = scmp.ne.s32.totalorder %s377, %s378
      %p387 = scmp.eq.s32.totalorder %s31, 0
      %p388 = por %p386, %p387
      %p389 = scmp.ne.s32.totalorder %s377, %s378
      %p390 = scmp.eq.s32.totalorder %s32, 1
      %p391 = por %p389, %p390
      %p393 = scmp.ne.s32.totalorder %s378, %s392
      %p394 = scmp.eq.s32.totalorder %s32, 0
      %p395 = por %p393, %p394
      %s396 = ssub.s32 %s26, %s33
      %p397 = scmp.eq.s32.totalorder %s396, 0
      %s399 = sadd.s32 %s398, 1
      %s400 = scalar_select %p397, %s398, %s399
      %p403 = pneg %p397
      %p404 = scmp.eq.s32.totalorder %s26, 1
      %p405 = por %p403, %p404
      %p406 = scmp.ne.s32.totalorder %s398, %s401
      %p407 = scmp.eq.s32.totalorder %s26, 0
      %p408 = por %p406, %p407
      %p409 = scmp.ne.s32.totalorder %s398, %s401
      %p410 = scmp.eq.s32.totalorder %s31, 1
      %p411 = por %p409, %p410
      %p412 = scmp.ne.s32.totalorder %s401, %s402
      %p413 = scmp.eq.s32.totalorder %s31, 0
      %p414 = por %p412, %p413
      %p415 = scmp.ne.s32.totalorder %s401, %s402
      %p416 = scmp.eq.s32.totalorder %s32, 1
      %p417 = por %p415, %p416
      %p419 = scmp.ne.s32.totalorder %s402, %s418
      %p420 = scmp.eq.s32.totalorder %s32, 0
      %p421 = por %p419, %p420
      %p422 = scmp.le.s32.totalorder 1, %s26
      %p423 = scmp.lt.s32.totalorder %s26, 3
      %p424 = pnand %p422, %p423
      %p425 = pneg %p424
      // Predicated region
      $region9: #{encoder_forward.1} parent=5 // pred_check
        _
      $region10: #{encoder_forward.1} parent=5 // pred_check_branch
        %427 = sbr.rel (%p424) target = $region12
      $region11: #{encoder_forward.1} parent=5 // pred_region
        %s428 = ssub.s32 %s26, 1
        // Predicated region
        $region13: #{encoder_forward.1} parent=11 // pred_check
          %p429 = pneg %p73
        $region14: #{encoder_forward.1} parent=11 // pred_check_branch
          %431 = sbr.rel (%p429) target = $region16
        $region15: #{encoder_forward.1} parent=11 // pred_region
          _
        $region16: #{encoder_forward.1} parent=11 // pred_fallthru
          _
        // Predicated region
        $region17: #{encoder_forward.1} parent=11 // pred_check
          %p432 = pneg %p94
        $region18: #{encoder_forward.1} parent=11 // pred_check_branch
          %434 = sbr.rel (%p432) target = $region20
        $region19: #{encoder_forward.1} parent=11 // pred_region
          _
        $region20: #{encoder_forward.1} parent=11 // pred_fallthru
          _
        // Predicated region
        $region21: #{encoder_forward.1} parent=11 // pred_check
          %p435 = pneg %p115
        $region22: #{encoder_forward.1} parent=11 // pred_check_branch
          %437 = sbr.rel (%p435) target = $region24
        $region23: #{encoder_forward.1} parent=11 // pred_region
          _
        $region24: #{encoder_forward.1} parent=11 // pred_fallthru
          _
        // Predicated region
        $region25: #{encoder_forward.1} parent=11 // pred_check
          %p438 = pneg %p136
        $region26: #{encoder_forward.1} parent=11 // pred_check_branch
          %440 = sbr.rel (%p438) target = $region28
        $region27: #{encoder_forward.1} parent=11 // pred_region
          _
        $region28: #{encoder_forward.1} parent=11 // pred_fallthru
          _
        // Predicated region
        $region29: #{encoder_forward.1} parent=11 // pred_check
          %p441 = pneg %p157
        $region30: #{encoder_forward.1} parent=11 // pred_check_branch
          %443 = sbr.rel (%p441) target = $region32
        $region31: #{encoder_forward.1} parent=11 // pred_region
          _
        $region32: #{encoder_forward.1} parent=11 // pred_fallthru
          _
        // Predicated region
        $region33: #{encoder_forward.1} parent=11 // pred_check
          %p444 = pneg %p178
        $region34: #{encoder_forward.1} parent=11 // pred_check_branch
          %446 = sbr.rel (%p444) target = $region36
        $region35: #{encoder_forward.1} parent=11 // pred_region
          _
        $region36: #{encoder_forward.1} parent=11 // pred_fallthru
          _
        // Predicated region
        $region37: #{encoder_forward.1} parent=11 // pred_check
          %p447 = pneg %p199
        $region38: #{encoder_forward.1} parent=11 // pred_check_branch
          %449 = sbr.rel (%p447) target = $region40
        $region39: #{encoder_forward.1} parent=11 // pred_region
          _
        $region40: #{encoder_forward.1} parent=11 // pred_fallthru
          _
        // Predicated region
        $region41: #{encoder_forward.1} parent=11 // pred_check
          %p450 = pneg %p220
        $region42: #{encoder_forward.1} parent=11 // pred_check_branch
          %452 = sbr.rel (%p450) target = $region44
        $region43: #{encoder_forward.1} parent=11 // pred_region
          _
        $region44: #{encoder_forward.1} parent=11 // pred_fallthru
          _
        // Predicated region
        $region45: #{encoder_forward.1} parent=11 // pred_check
          %p453 = pneg %p241
        $region46: #{encoder_forward.1} parent=11 // pred_check_branch
          %455 = sbr.rel (%p453) target = $region48
        $region47: #{encoder_forward.1} parent=11 // pred_region
          _
        $region48: #{encoder_forward.1} parent=11 // pred_fallthru
          _
        // Predicated region
        $region49: #{encoder_forward.1} parent=11 // pred_check
          %p456 = pneg %p262
        $region50: #{encoder_forward.1} parent=11 // pred_check_branch
          %458 = sbr.rel (%p456) target = $region52
        $region51: #{encoder_forward.1} parent=11 // pred_region
          _
        $region52: #{encoder_forward.1} parent=11 // pred_fallthru
          _
        // Predicated region
        $region53: #{encoder_forward.1} parent=11 // pred_check
          %p459 = pneg %p283
        $region54: #{encoder_forward.1} parent=11 // pred_check_branch
          %461 = sbr.rel (%p459) target = $region56
        $region55: #{encoder_forward.1} parent=11 // pred_region
          _
        $region56: #{encoder_forward.1} parent=11 // pred_fallthru
          _
        // Predicated region
        $region57: #{encoder_forward.1} parent=11 // pred_check
          %p462 = pneg %p304
        $region58: #{encoder_forward.1} parent=11 // pred_check_branch
          %464 = sbr.rel (%p462) target = $region60
        $region59: #{encoder_forward.1} parent=11 // pred_region
          _
        $region60: #{encoder_forward.1} parent=11 // pred_fallthru
          _
        // Predicated region
        $region61: #{encoder_forward.1} parent=11 // pred_check
          %p465 = pneg %p325
        $region62: #{encoder_forward.1} parent=11 // pred_check_branch
          %467 = sbr.rel (%p465) target = $region64
        $region63: #{encoder_forward.1} parent=11 // pred_region
          _
        $region64: #{encoder_forward.1} parent=11 // pred_fallthru
          _
        // Predicated region
        $region65: #{encoder_forward.1} parent=11 // pred_check
          %p468 = pneg %p346
        $region66: #{encoder_forward.1} parent=11 // pred_check_branch
          %470 = sbr.rel (%p468) target = $region68
        $region67: #{encoder_forward.1} parent=11 // pred_region
          _
        $region68: #{encoder_forward.1} parent=11 // pred_fallthru
          _
        // Predicated region
        $region69: #{encoder_forward.1} parent=11 // pred_check
          %p471 = pneg %p367
        $region70: #{encoder_forward.1} parent=11 // pred_check_branch
          %473 = sbr.rel (%p471) target = $region72
        $region71: #{encoder_forward.1} parent=11 // pred_region
          _
        $region72: #{encoder_forward.1} parent=11 // pred_fallthru
          _
        // Predicated region
        $region73: #{encoder_forward.1} parent=11 // pred_check
          %p474 = pneg %p388
        $region74: #{encoder_forward.1} parent=11 // pred_check_branch
          %476 = sbr.rel (%p474) target = $region76
        $region75: #{encoder_forward.1} parent=11 // pred_region
          _
        $region76: #{encoder_forward.1} parent=11 // pred_fallthru
          _
      $region12: #{encoder_forward.1} parent=5 // pred_fallthru
        _
      %p477 = scmp.lt.s32.totalorder %s26, 2
      // Predicated region
      $region77: #{encoder_forward.1} parent=5 // pred_check
        %p478 = pneg %p477
      $region78: #{encoder_forward.1} parent=5 // pred_check_branch
        %480 = sbr.rel (%p478) target = $region80
      $region79: #{encoder_forward.1} parent=5 // pred_region
        // Predicated region
        $region81: #{encoder_forward.1} parent=79 // pred_check
          %p481 = pneg %p46
        $region82: #{encoder_forward.1} parent=79 // pred_check_branch
          %483 = sbr.rel (%p481) target = $region84
        $region83: #{encoder_forward.1} parent=79 // pred_region
          %s484 = smul.u32 2, %s26
          %p485 = scmp.lt.s32.totalorder %s484, 3
          %s486 = scalar_select %p485, %s484, 3
          %s487 = smul.addr %s486, 8
          %s488 = scalar_lea.vmem %s0, %s487
          %s489 = smul.u32 2, %s26
        $region84: #{encoder_forward.1} parent=79 // pred_fallthru
          _
      $region80: #{encoder_forward.1} parent=5 // pred_fallthru
        _
      %p490 = scmp.le.s32.totalorder 1, %s26
      %p491 = scmp.lt.s32.totalorder %s26, 3
      %p492 = pnand %p490, %p491
      %p493 = pneg %p492
      // Predicated region
      $region85: #{encoder_forward.1} parent=5 // pred_check
        _
      $region86: #{encoder_forward.1} parent=5 // pred_check_branch
        %495 = sbr.rel (%p492) target = $region88
      $region87: #{encoder_forward.1} parent=5 // pred_region
        %s496 = ssub.s32 %s26, 1
        %s497 = smul.u32 2, %s31
        %p498 = scmp.lt.s32.totalorder %s497, 3
        %s499 = scalar_select %p498, %s497, 3
        %s500 = smul.addr %s499, 8
        %s501 = scalar_lea.vmem %s0, %s500
        %p502 = pneg %p52
        %p503 = pneg %p49
        %p504 = pneg %p73
        %p505 = pneg %p70
        %p506 = pneg %p94
        %p507 = pneg %p91
        %p508 = pneg %p115
        %p509 = pneg %p112
        %p510 = pneg %p136
        %p511 = pneg %p133
        %p512 = pneg %p157
        %p513 = pneg %p154
        %p514 = pneg %p178
        %p515 = pneg %p175
        %p516 = pneg %p199
        %p517 = pneg %p196
        %p518 = pneg %p220
        %p519 = pneg %p217
        %p520 = pneg %p241
        %p521 = pneg %p238
        %p522 = pneg %p262
        %p523 = pneg %p259
        %p524 = pneg %p283
        %p525 = pneg %p280
        %p526 = pneg %p304
        %p527 = pneg %p301
        %p528 = pneg %p325
        %p529 = pneg %p322
        %p530 = pneg %p346
        %p531 = pneg %p343
        %p532 = pneg %p367
        %p533 = pneg %p364
        %p534 = pneg %p388
        %p535 = pneg %p385
        %p536 = pneg %p414
        %p537 = pneg %p411
        %s538 = sand.u32 %s401, 1
        %s539 = scalar_lea.sflag [#allocation3], %s538
        %s540 = sand.u32 %s401, 1
        %s541 = smul.addr %s540, 16
        %s542 = scalar_lea.vmem [#allocation2], %s541
        %s543 = smul.u32 2, %s31
        %p544 = scmp.lt.s32.totalorder %s543, 3
        %s545 = scalar_select %p544, %s543, 3
        %s546 = smul.addr %s545, 8
        %s547 = scalar_lea.vmem %s0, %s546
        %s548 = smul.u32 2, %s31
        %s549 = smul.u32 2, %s31
        %v551 = vld [vmem:[%s547] sm:$0xff]
        %v552 = vld [vmem:[%s547 + $0x8] sm:$0xff]
        %v553 = vpack.c.bf16 %v552, %v551
        %v554 = vld [vmem:[%s1] sm:$0xff]
        %v555 = vld [vmem:[%s1 + $0x8] sm:$0xf]
        %v556 = vld [vmem:[%s1 + $0xc] sm:$0xff]
        %v557 = vld [vmem:[%s1 + $0x14] sm:$0xf]
        %v558 = vld [vmem:[%s1 + $0x18] sm:$0xff]
        %v559 = vld [vmem:[%s1 + $0x20] sm:$0xf]
        %v560 = vld [vmem:[%s1 + $0x24] sm:$0xff]
        %v561 = vld [vmem:[%s1 + $0x2c] sm:$0xf]
        %v562 = vld [vmem:[%s1 + $0x30] sm:$0xff]
        %v563 = vld [vmem:[%s1 + $0x38] sm:$0xf]
        %v564 = vld [vmem:[%s1 + $0x3c] sm:$0xff]
        %v565 = vld [vmem:[%s1 + $0x44] sm:$0xf]
        %v566 = vld [vmem:[%s1 + $0x48] sm:$0xff]
        %v567 = vld [vmem:[%s1 + $0x50] sm:$0xf]
        %v568 = vld [vmem:[%s1 + $0x54] sm:$0xff]
        %v569 = vld [vmem:[%s1 + $0x5c] sm:$0xf]
        %v570 = vld [vmem:[%s1 + $0x60] sm:$0xff]
        %v571 = vld [vmem:[%s1 + $0x68] sm:$0xf]
        %v572 = vld [vmem:[%s1 + $0x6c] sm:$0xff]
        %v573 = vld [vmem:[%s1 + $0x74] sm:$0xf]
        %v574 = vld [vmem:[%s1 + $0x78] sm:$0xff]
        %v575 = vld [vmem:[%s1 + $0x80] sm:$0xf]
        %v576 = vld [vmem:[%s1 + $0x84] sm:$0xff]
        %v577 = vld [vmem:[%s1 + $0x8c] sm:$0xf]
        %v578 = vld [vmem:[%s1 + $0x90] sm:$0xff]
        %v579 = vld [vmem:[%s1 + $0x98] sm:$0xf]
        %v580 = vld [vmem:[%s1 + $0x9c] sm:$0xff]
        %v581 = vld [vmem:[%s1 + $0xa4] sm:$0xf]
        %v582 = vld [vmem:[%s1 + $0xa8] sm:$0xff]
        %v583 = vld [vmem:[%s1 + $0xb0] sm:$0xf]
        %v584 = vld [vmem:[%s1 + $0xb4] sm:$0xff]
        %v585 = vld [vmem:[%s1 + $0xbc] sm:$0xf]
        %v586 = vld [vmem:[%s2] sm:$0x7]
        %v588 = vlaneseq
        %v589 = vshrl.u32 %v588, 7
        %v590 = vsub.s32 0, %v589
        %v591 = vrot.slane %v586, %v590
        %v592 = vlaneseq
        %v593 = vshrl.u32 %v592, 7
        %v594 = vsub.s32 1, %v593
        %v595 = vrot.slane %v586, %v594
        %v596 = vlaneseq
        %v597 = vshrl.u32 %v596, 7
        %v598 = vsub.s32 2, %v597
        %v599 = vrot.slane %v586, %v598
        %v635 = vunpack.c.l.b16 %v554
        %v636 = vunpack.c.h.b16 %v554
        %v637 = vunpack.c.l.b16 %v555
        %v638 = vunpack.c.l.b16 %v556
        %v639 = vunpack.c.h.b16 %v556
        %v640 = vunpack.c.l.b16 %v557
        %v641 = vunpack.c.l.b16 %v558
        %v642 = vunpack.c.h.b16 %v558
        %v643 = vunpack.c.l.b16 %v559
        %v644 = vunpack.c.l.b16 %v560
        %v645 = vunpack.c.h.b16 %v560
        %v646 = vunpack.c.l.b16 %v561
        %v647 = vunpack.c.l.b16 %v562
        %v648 = vunpack.c.h.b16 %v562
        %v649 = vunpack.c.l.b16 %v563
        %v650 = vunpack.c.l.b16 %v564
        %v651 = vunpack.c.h.b16 %v564
        %v652 = vunpack.c.l.b16 %v565
        %v653 = vunpack.c.l.b16 %v566
        %v654 = vunpack.c.h.b16 %v566
        %v655 = vunpack.c.l.b16 %v567
        %v656 = vunpack.c.l.b16 %v568
        %v657 = vunpack.c.h.b16 %v568
        %v658 = vunpack.c.l.b16 %v569
        %v659 = vunpack.c.l.b16 %v570
        %v660 = vunpack.c.h.b16 %v570
        %v661 = vunpack.c.l.b16 %v571
        %v662 = vunpack.c.l.b16 %v572
        %v663 = vunpack.c.h.b16 %v572
        %v664 = vunpack.c.l.b16 %v573
        %v665 = vunpack.c.l.b16 %v574
        %v666 = vunpack.c.h.b16 %v574
        %v667 = vunpack.c.l.b16 %v575
        %v668 = vunpack.c.l.b16 %v576
        %v669 = vunpack.c.h.b16 %v576
        %v670 = vunpack.c.l.b16 %v577
        %v671 = vunpack.c.l.b16 %v578
        %v672 = vunpack.c.h.b16 %v578
        %v673 = vunpack.c.l.b16 %v579
        %v674 = vunpack.c.l.b16 %v580
        %v675 = vunpack.c.h.b16 %v580
        %v676 = vunpack.c.l.b16 %v581
        %v677 = vunpack.c.l.b16 %v582
        %v678 = vunpack.c.h.b16 %v582
        %v679 = vunpack.c.l.b16 %v583
        %v680 = vunpack.c.l.b16 %v584
        %v681 = vunpack.c.h.b16 %v584
        %v682 = vunpack.c.l.b16 %v585
        %v683 = vpack.c.b16 %v638, %v635
        %v684 = vpack.c.b16 %v639, %v636
        %v685 = vpack.c.b16 %v640, %v637
        %v686 = vpack.c.b16 %v644, %v641
        %v687 = vpack.c.b16 %v645, %v642
        %v688 = vpack.c.b16 %v646, %v643
        %v689 = vpack.c.b16 %v650, %v647
        %v690 = vpack.c.b16 %v651, %v648
        %v691 = vpack.c.b16 %v652, %v649
        %v692 = vpack.c.b16 %v656, %v653
        %v693 = vpack.c.b16 %v657, %v654
        %v694 = vpack.c.b16 %v658, %v655
        %v695 = vpack.c.b16 %v662, %v659
        %v696 = vpack.c.b16 %v663, %v660
        %v697 = vpack.c.b16 %v664, %v661
        %v698 = vpack.c.b16 %v668, %v665
        %v699 = vpack.c.b16 %v669, %v666
        %v700 = vpack.c.b16 %v670, %v667
        %v701 = vpack.c.b16 %v674, %v671
        %v702 = vpack.c.b16 %v675, %v672
        %v703 = vpack.c.b16 %v676, %v673
        %v704 = vpack.c.b16 %v680, %v677
        %v705 = vpack.c.b16 %v681, %v678
        %v706 = vpack.c.b16 %v682, %v679
        %731 = vmatprep.subr.bf16.mxu0 %v684
        %732 = vmatpush1.bf16.msra.mxu0 %v683
        %733 = vmatprep.subr.bf16.mxu0 %v687
        %734 = vmatpush1.bf16.msra.mxu0 %v686
        %735 = vmatprep.subr.bf16.mxu0 %v690
        %736 = vmatpush1.bf16.msra.mxu0 %v689
        %737 = vmatprep.subr.bf16.mxu0 %v693
        %738 = vmatpush1.bf16.msra.mxu0 %v692
        %739 = vmatprep.subr.bf16.mxu0 %v696
        %740 = vmatpush1.bf16.msra.mxu0 %v695
        %741 = vmatprep.subr.bf16.mxu0 %v699
        %742 = vmatpush1.bf16.msra.mxu0 %v698
        %743 = vmatprep.subr.bf16.mxu0 %v702
        %744 = vmatpush1.bf16.msra.mxu0 %v701
        %745 = vmatprep.subr.bf16.mxu0 %v705
        %746 = vmatpush1.bf16.msra.mxu0 %v704
        %747 = vmatprep.subr.bf16.mxu0 0
        %748 = vmatpush1.bf16.msra.mxu0 0
        %749 = vmatprep.subr.bf16.mxu0 0
        %750 = vmatpush1.bf16.msra.mxu0 0
        %751 = vmatprep.subr.bf16.mxu0 0
        %752 = vmatpush1.bf16.msra.mxu0 0
        %753 = vmatprep.subr.bf16.mxu0 0
        %754 = vmatpush1.bf16.msra.mxu0 0
        %755 = vmatprep.subr.bf16.mxu0 0
        %756 = vmatpush1.bf16.msra.mxu0 0
        %757 = vmatprep.subr.bf16.mxu0 0
        %758 = vmatpush1.bf16.msra.mxu0 0
        %759 = vmatprep.subr.bf16.mxu0 0
        %760 = vmatpush1.bf16.msra.mxu0 0
        %761 = vmatprep.subr.bf16.mxu0 0
        %762 = vmatpush1.bf16.msra.mxu0 0
        %763 = vmatprep.mubr.bf16.mxu0 0
        %764 = vmatmul.mubr.bf16.gmra.mrb[0].mxu0 %v553
        %v765 = vpop.f32.mrb[0].mxu0
        %v766 = vadd.f32 %v591, %v765
        %v767 = vpop.f32.mrb[0].mxu0
        %v768 = vadd.f32 %v595, %v767
        %v769 = vpop.f32.mrb[0].mxu0
        %v770 = vadd.f32 %v591, %v769
        %v771 = vpop.f32.mrb[0].mxu0
        %v772 = vadd.f32 %v595, %v771
        %773 = vdwg.mxu0
        %774 = vmatprep.subr.bf16.mxu0 0
        %775 = vmatpush1.bf16.msra.mxu0 %v685
        %776 = vmatprep.subr.bf16.mxu0 0
        %777 = vmatpush1.bf16.msra.mxu0 %v688
        %778 = vmatprep.subr.bf16.mxu0 0
        %779 = vmatpush1.bf16.msra.mxu0 %v691
        %780 = vmatprep.subr.bf16.mxu0 0
        %781 = vmatpush1.bf16.msra.mxu0 %v694
        %782 = vmatprep.subr.bf16.mxu0 0
        %783 = vmatpush1.bf16.msra.mxu0 %v697
        %784 = vmatprep.subr.bf16.mxu0 0
        %785 = vmatpush1.bf16.msra.mxu0 %v700
        %786 = vmatprep.subr.bf16.mxu0 0
        %787 = vmatpush1.bf16.msra.mxu0 %v703
        %788 = vmatprep.subr.bf16.mxu0 0
        %789 = vmatpush1.bf16.msra.mxu0 %v706
        %790 = vmatprep.subr.bf16.mxu0 0
        %791 = vmatpush1.bf16.msra.mxu0 0
        %792 = vmatprep.subr.bf16.mxu0 0
        %793 = vmatpush1.bf16.msra.mxu0 0
        %794 = vmatprep.subr.bf16.mxu0 0
        %795 = vmatpush1.bf16.msra.mxu0 0
        %796 = vmatprep.subr.bf16.mxu0 0
        %797 = vmatpush1.bf16.msra.mxu0 0
        %798 = vmatprep.subr.bf16.mxu0 0
        %799 = vmatpush1.bf16.msra.mxu0 0
        %800 = vmatprep.subr.bf16.mxu0 0
        %801 = vmatpush1.bf16.msra.mxu0 0
        %802 = vmatprep.subr.bf16.mxu0 0
        %803 = vmatpush1.bf16.msra.mxu0 0
        %804 = vmatprep.subr.bf16.mxu0 0
        %805 = vmatpush1.bf16.msra.mxu0 0
        %806 = vmatprep.mubr.bf16.mxu0 0
        %807 = vmatmul.mubr.bf16.gmra.mrb[0].mxu0 %v553
        %v808 = vpop.f32.mrb[0].mxu0
        %v809 = vadd.f32 %v599, %v808
        %v810 = vpop.f32.mrb[0].mxu0
        %v811 = vpop.f32.mrb[0].mxu0
        %v812 = vadd.f32 %v599, %v811
        %v813 = vpop.f32.mrb[0].mxu0
        %814 = vdwg.mxu0
        %v815 = vpack.c.bf16 %v770, %v766
        %816 = vxpose.xlu0.b32.start [1/16] %v768, 128
        %817 = vxpose.xlu0.b32.cont [2/16] %v772, 128
        %818 = vxpose.xlu0.b32.cont [3/16] 0.0, 128
        %819 = vxpose.xlu0.b32.cont [4/16] 0.0, 128
        %820 = vxpose.xlu0.b32.cont [5/16] 0.0, 128
        %821 = vxpose.xlu0.b32.cont [6/16] 0.0, 128
        %822 = vxpose.xlu0.b32.cont [7/16] 0.0, 128
        %823 = vxpose.xlu0.b32.cont [8/16] 0.0, 128
        %824 = vxpose.xlu0.b32.cont [9/16] 0.0, 128
        %825 = vxpose.xlu0.b32.cont [10/16] 0.0, 128
        %826 = vxpose.xlu0.b32.cont [11/16] 0.0, 128
        %827 = vxpose.xlu0.b32.cont [12/16] 0.0, 128
        %828 = vxpose.xlu0.b32.cont [13/16] 0.0, 128
        %829 = vxpose.xlu0.b32.cont [14/16] 0.0, 128
        %830 = vxpose.xlu0.b32.cont [15/16] 0.0, 128
        %831 = vxpose.xlu0.b32.end [16/16] 0.0, 128
        %v832 = vpop.trf.xlu0
        %v833 = vpop.trf.xlu0
        %v834 = vpop.trf.xlu0
        %v835 = vpop.trf.xlu0
        %v836 = vpop.trf.xlu0
        %v837 = vpop.trf.xlu0
        %v838 = vpop.trf.xlu0
        %v839 = vpop.trf.xlu0
        %v840 = vpop.trf.xlu0
        %v841 = vpop.trf.xlu0
        %v842 = vpop.trf.xlu0
        %v843 = vpop.trf.xlu0
        %v844 = vpop.trf.xlu0
        %v845 = vpop.trf.xlu0
        %v846 = vpop.trf.xlu0
        %v847 = vpop.trf.xlu0
        %v848 = vpack.c.bf16 %v833, %v832
        %v849 = vpack.c.bf16 %v835, %v834
        %v850 = vpack.c.bf16 %v837, %v836
        %v851 = vpack.c.bf16 %v839, %v838
        %v852 = vpack.c.bf16 %v841, %v840
        %v853 = vpack.c.bf16 %v843, %v842
        %v854 = vpack.c.bf16 %v845, %v844
        %v855 = vpack.c.bf16 %v847, %v846
        %v856 = vpack.c.bf16 %v812, %v809
        %v857 = vld [vmem:[%s13] sm:$0xff]
        %v858 = vld [vmem:[%s13 + $0x8] sm:$0xff]
        %v861 = vunpack.c.l.b16 %v857
        %v862 = vunpack.c.h.b16 %v857
        %v863 = vunpack.c.l.b16 %v858
        %v864 = vunpack.c.h.b16 %v858
        %v865 = vpack.c.b16 %v863, %v861
        %v866 = vpack.c.b16 %v864, %v862
        %vm869 = vcmask 130048
        %v871 = vsel %vm869, %v848, 0
        %v874 = vsel %vm869, %v849, 0
        %v877 = vsel %vm869, %v850, 0
        %v880 = vsel %vm869, %v851, 0
        %v883 = vsel %vm869, %v852, 0
        %v886 = vsel %vm869, %v853, 0
        %v889 = vsel %vm869, %v854, 0
        %v892 = vsel %vm869, %v855, 0
        %894 = vmatprep.subr.bf16.mxu0 %v866
        %895 = vmatpush1.bf16.msra.mxu0 %v865
        %896 = vmatprep.subr.bf16.mxu0 0
        %897 = vmatpush1.bf16.msra.mxu0 0
        %898 = vmatprep.subr.bf16.mxu0 0
        %899 = vmatpush1.bf16.msra.mxu0 0
        %900 = vmatprep.subr.bf16.mxu0 0
        %901 = vmatpush1.bf16.msra.mxu0 0
        %902 = vmatprep.subr.bf16.mxu0 0
        %903 = vmatpush1.bf16.msra.mxu0 0
        %904 = vmatprep.subr.bf16.mxu0 0
        %905 = vmatpush1.bf16.msra.mxu0 0
        %906 = vmatprep.subr.bf16.mxu0 0
        %907 = vmatpush1.bf16.msra.mxu0 0
        %908 = vmatprep.subr.bf16.mxu0 0
        %909 = vmatpush1.bf16.msra.mxu0 0
        %910 = vmatprep.subr.bf16.mxu0 0
        %911 = vmatpush1.bf16.msra.mxu0 0
        %912 = vmatprep.subr.bf16.mxu0 0
        %913 = vmatpush1.bf16.msra.mxu0 0
        %914 = vmatprep.subr.bf16.mxu0 0
        %915 = vmatpush1.bf16.msra.mxu0 0
        %916 = vmatprep.subr.bf16.mxu0 0
        %917 = vmatpush1.bf16.msra.mxu0 0
        %918 = vmatprep.subr.bf16.mxu0 0
        %919 = vmatpush1.bf16.msra.mxu0 0
        %920 = vmatprep.subr.bf16.mxu0 0
        %921 = vmatpush1.bf16.msra.mxu0 0
        %922 = vmatprep.subr.bf16.mxu0 0
        %923 = vmatpush1.bf16.msra.mxu0 0
        %924 = vmatprep.subr.bf16.mxu0 0
        %925 = vmatpush1.bf16.msra.mxu0 0
        %926 = vmatprep.mubr.bf16.mxu0 0
        %927 = vmatmul.mubr.bf16.gmra.mrb[0].mxu0 %v871
        %v928 = vpop.f32.mrb[0].mxu0
        %v929 = vadd.f32 0.0, %v928
        %v930 = vpop.f32.mrb[0].mxu0
        %v931 = vadd.f32 0.0, %v930
        %v932 = vpop.f32.mrb[0].mxu0
        %v933 = vadd.f32 0.0, %v932
        %v934 = vpop.f32.mrb[0].mxu0
        %v935 = vadd.f32 0.0, %v934
        %936 = vmatprep.mubr.bf16.mxu0 0
        %937 = vmatmul.mubr.bf16.gmra.mrb[0].mxu0 %v874
        %v938 = vpop.f32.mrb[0].mxu0
        %v939 = vadd.f32 0.0, %v938
        %v940 = vpop.f32.mrb[0].mxu0
        %v941 = vadd.f32 0.0, %v940
        %v942 = vpop.f32.mrb[0].mxu0
        %v943 = vadd.f32 0.0, %v942
        %v944 = vpop.f32.mrb[0].mxu0
        %v945 = vadd.f32 0.0, %v944
        %946 = vmatprep.mubr.bf16.mxu0 0
        %947 = vmatmul.mubr.bf16.gmra.mrb[0].mxu0 %v877
        %v948 = vpop.f32.mrb[0].mxu0
        %v949 = vadd.f32 0.0, %v948
        %v950 = vpop.f32.mrb[0].mxu0
        %v951 = vadd.f32 0.0, %v950
        %v952 = vpop.f32.mrb[0].mxu0
        %v953 = vadd.f32 0.0, %v952
        %v954 = vpop.f32.mrb[0].mxu0
        %v955 = vadd.f32 0.0, %v954
        %956 = vmatprep.mubr.bf16.mxu0 0
        %957 = vmatmul.mubr.bf16.gmra.mrb[0].mxu0 %v880
        %v958 = vpop.f32.mrb[0].mxu0
        %v959 = vadd.f32 0.0, %v958
        %v960 = vpop.f32.mrb[0].mxu0
        %v961 = vadd.f32 0.0, %v960
        %v962 = vpop.f32.mrb[0].mxu0
        %v963 = vadd.f32 0.0, %v962
        %v964 = vpop.f32.mrb[0].mxu0
        %v965 = vadd.f32 0.0, %v964
        %966 = vmatprep.mubr.bf16.mxu0 0
        %967 = vmatmul.mubr.bf16.gmra.mrb[0].mxu0 %v883
        %v968 = vpop.f32.mrb[0].mxu0
        %v969 = vadd.f32 0.0, %v968
        %v970 = vpop.f32.mrb[0].mxu0
        %v971 = vadd.f32 0.0, %v970
        %v972 = vpop.f32.mrb[0].mxu0
        %v973 = vadd.f32 0.0, %v972
        %v974 = vpop.f32.mrb[0].mxu0
        %v975 = vadd.f32 0.0, %v974
        %976 = vmatprep.mubr.bf16.mxu0 0
        %977 = vmatmul.mubr.bf16.gmra.mrb[0].mxu0 %v886
        %v978 = vpop.f32.mrb[0].mxu0
        %v979 = vadd.f32 0.0, %v978
        %v980 = vpop.f32.mrb[0].mxu0
        %v981 = vadd.f32 0.0, %v980
        %v982 = vpop.f32.mrb[0].mxu0
        %v983 = vadd.f32 0.0, %v982
        %v984 = vpop.f32.mrb[0].mxu0
        %v985 = vadd.f32 0.0, %v984
        %986 = vmatprep.mubr.bf16.mxu0 0
        %987 = vmatmul.mubr.bf16.gmra.mrb[0].mxu0 %v889
        %v988 = vpop.f32.mrb[0].mxu0
        %v989 = vadd.f32 0.0, %v988
        %v990 = vpop.f32.mrb[0].mxu0
        %v991 = vadd.f32 0.0, %v990
        %v992 = vpop.f32.mrb[0].mxu0
        %v993 = vadd.f32 0.0, %v992
        %v994 = vpop.f32.mrb[0].mxu0
        %v995 = vadd.f32 0.0, %v994
        %996 = vmatprep.mubr.bf16.mxu0 0
        %997 = vmatmul.mubr.bf16.gmra.mrb[0].mxu0 %v892
        %v998 = vpop.f32.mrb[0].mxu0
        %v999 = vadd.f32 0.0, %v998
        %v1000 = vpop.f32.mrb[0].mxu0
        %v1001 = vadd.f32 0.0, %v1000
        %v1002 = vpop.f32.mrb[0].mxu0
        %v1003 = vadd.f32 0.0, %v1002
        %v1004 = vpop.f32.mrb[0].mxu0
        %v1005 = vadd.f32 0.0, %v1004
        %1006 = vdwg.mxu0
        %v1007 = vpack.c.bf16 %v933, %v929
        %v1008 = vpack.c.bf16 %v935, %v931
        %v1009 = vpack.c.bf16 %v943, %v939
        %v1010 = vpack.c.bf16 %v945, %v941
        %v1011 = vpack.c.bf16 %v953, %v949
        %v1012 = vpack.c.bf16 %v955, %v951
        %v1013 = vpack.c.bf16 %v963, %v959
        %v1014 = vpack.c.bf16 %v965, %v961
        %v1015 = vpack.c.bf16 %v973, %v969
        %v1016 = vpack.c.bf16 %v975, %v971
        %v1017 = vpack.c.bf16 %v983, %v979
        %v1018 = vpack.c.bf16 %v985, %v981
        %v1019 = vpack.c.bf16 %v993, %v989
        %v1020 = vpack.c.bf16 %v995, %v991
        %v1021 = vpack.c.bf16 %v1003, %v999
        %v1022 = vpack.c.bf16 %v1005, %v1001
        %v1023 = vld [vmem:[%s15] sm:$0xff]
        %v1024 = vld [vmem:[%s15 + $0x8] sm:$0xff]
        %v1025 = vld [vmem:[%s15 + $0x10] sm:$0xff]
        %v1026 = vld [vmem:[%s15 + $0x18] sm:$0xff]
        %v1027 = vld [vmem:[%s15 + $0x20] sm:$0xff]
        %v1028 = vld [vmem:[%s15 + $0x28] sm:$0xff]
        %v1029 = vld [vmem:[%s15 + $0x30] sm:$0xff]
        %v1030 = vld [vmem:[%s15 + $0x38] sm:$0xff]
        %v1031 = vld [vmem:[%s15 + $0x40] sm:$0xff]
        %v1032 = vld [vmem:[%s15 + $0x48] sm:$0xff]
        %v1033 = vld [vmem:[%s15 + $0x50] sm:$0xff]
        %v1034 = vld [vmem:[%s15 + $0x58] sm:$0xff]
        %v1035 = vld [vmem:[%s15 + $0x60] sm:$0xff]
        %v1036 = vld [vmem:[%s15 + $0x68] sm:$0xff]
        %v1037 = vld [vmem:[%s15 + $0x70] sm:$0xff]
        %v1038 = vld [vmem:[%s15 + $0x78] sm:$0xff]
        %v1055 = vunpack.c.l.b16 %v1023
        %v1056 = vunpack.c.h.b16 %v1023
        %v1057 = vunpack.c.l.b16 %v1024
        %v1058 = vunpack.c.h.b16 %v1024
        %v1059 = vunpack.c.l.b16 %v1025
        %v1060 = vunpack.c.h.b16 %v1025
        %v1061 = vunpack.c.l.b16 %v1026
        %v1062 = vunpack.c.h.b16 %v1026
        %v1063 = vunpack.c.l.b16 %v1027
        %v1064 = vunpack.c.h.b16 %v1027
        %v1065 = vunpack.c.l.b16 %v1028
        %v1066 = vunpack.c.h.b16 %v1028
        %v1067 = vunpack.c.l.b16 %v1029
        %v1068 = vunpack.c.h.b16 %v1029
        %v1069 = vunpack.c.l.b16 %v1030
        %v1070 = vunpack.c.h.b16 %v1030
        %v1071 = vunpack.c.l.b16 %v1031
        %v1072 = vunpack.c.h.b16 %v1031
        %v1073 = vunpack.c.l.b16 %v1032
        %v1074 = vunpack.c.h.b16 %v1032
        %v1075 = vunpack.c.l.b16 %v1033
        %v1076 = vunpack.c.h.b16 %v1033
        %v1077 = vunpack.c.l.b16 %v1034
        %v1078 = vunpack.c.h.b16 %v1034
        %v1079 = vunpack.c.l.b16 %v1035
        %v1080 = vunpack.c.h.b16 %v1035
        %v1081 = vunpack.c.l.b16 %v1036
        %v1082 = vunpack.c.h.b16 %v1036
        %v1083 = vunpack.c.l.b16 %v1037
        %v1084 = vunpack.c.h.b16 %v1037
        %v1085 = vunpack.c.l.b16 %v1038
        %v1086 = vunpack.c.h.b16 %v1038
        %v1087 = vpack.c.b16 %v1057, %v1055
        %v1088 = vpack.c.b16 %v1058, %v1056
        %v1089 = vpack.c.b16 %v1061, %v1059
        %v1090 = vpack.c.b16 %v1062, %v1060
        %v1091 = vpack.c.b16 %v1065, %v1063
        %v1092 = vpack.c.b16 %v1066, %v1064
        %v1093 = vpack.c.b16 %v1069, %v1067
        %v1094 = vpack.c.b16 %v1070, %v1068
        %v1095 = vpack.c.b16 %v1073, %v1071
        %v1096 = vpack.c.b16 %v1074, %v1072
        %v1097 = vpack.c.b16 %v1077, %v1075
        %v1098 = vpack.c.b16 %v1078, %v1076
        %v1099 = vpack.c.b16 %v1081, %v1079
        %v1100 = vpack.c.b16 %v1082, %v1080
        %v1101 = vpack.c.b16 %v1085, %v1083
        %v1102 = vpack.c.b16 %v1086, %v1084
        %v1119 = vmul.bf16 %v1007, %v1087
        %v1120 = vmul.bf16 %v1008, %v1088
        %v1121 = vmul.bf16 %v1009, %v1089
        %v1122 = vmul.bf16 %v1010, %v1090
        %v1123 = vmul.bf16 %v1011, %v1091
        %v1124 = vmul.bf16 %v1012, %v1092
        %v1125 = vmul.bf16 %v1013, %v1093
        %v1126 = vmul.bf16 %v1014, %v1094
        %v1127 = vmul.bf16 %v1015, %v1095
        %v1128 = vmul.bf16 %v1016, %v1096
        %v1129 = vmul.bf16 %v1017, %v1097
        %v1130 = vmul.bf16 %v1018, %v1098
        %v1131 = vmul.bf16 %v1019, %v1099
        %v1132 = vmul.bf16 %v1020, %v1100
        %v1133 = vmul.bf16 %v1021, %v1101
        %v1134 = vmul.bf16 %v1022, %v1102
        %1135 = vmatprep.subr.bf16.mxu0 %v1120
        %1136 = vmatpush1.bf16.msra.mxu0 %v1119
        %1137 = vmatprep.subr.bf16.mxu0 %v1122
        %1138 = vmatpush1.bf16.msra.mxu0 %v1121
        %1139 = vmatprep.subr.bf16.mxu0 %v1124
        %1140 = vmatpush1.bf16.msra.mxu0 %v1123
        %1141 = vmatprep.subr.bf16.mxu0 %v1126
        %1142 = vmatpush1.bf16.msra.mxu0 %v1125
        %1143 = vmatprep.subr.bf16.mxu0 %v1128
        %1144 = vmatpush1.bf16.msra.mxu0 %v1127
        %1145 = vmatprep.subr.bf16.mxu0 %v1130
        %1146 = vmatpush1.bf16.msra.mxu0 %v1129
        %1147 = vmatprep.subr.bf16.mxu0 %v1132
        %1148 = vmatpush1.bf16.msra.mxu0 %v1131
        %1149 = vmatprep.subr.bf16.mxu0 %v1134
        %1150 = vmatpush1.bf16.msra.mxu0 %v1133
        %1151 = vmatprep.subr.bf16.mxu0 0
        %1152 = vmatpush1.bf16.msra.mxu0 0
        %1153 = vmatprep.subr.bf16.mxu0 0
        %1154 = vmatpush1.bf16.msra.mxu0 0
        %1155 = vmatprep.subr.bf16.mxu0 0
        %1156 = vmatpush1.bf16.msra.mxu0 0
        %1157 = vmatprep.subr.bf16.mxu0 0
        %1158 = vmatpush1.bf16.msra.mxu0 0
        %1159 = vmatprep.subr.bf16.mxu0 0
        %1160 = vmatpush1.bf16.msra.mxu0 0
        %1161 = vmatprep.subr.bf16.mxu0 0
        %1162 = vmatpush1.bf16.msra.mxu0 0
        %1163 = vmatprep.subr.bf16.mxu0 0
        %1164 = vmatpush1.bf16.msra.mxu0 0
        %1165 = vmatprep.subr.bf16.mxu0 0
        %1166 = vmatpush1.bf16.msra.mxu0 0
        %1167 = vmatprep.mubr.bf16.mxu0 0
        %1168 = vmatmul.mubr.bf16.gmra.mrb[0].mxu0 %v815
        %v1169 = vpop.f32.mrb[0].mxu0
        %v1170 = vadd.f32 0.0, %v1169
        %v1171 = vpop.f32.mrb[0].mxu0
        %v1172 = vadd.f32 0.0, %v1171
        %v1173 = vpop.f32.mrb[0].mxu0
        %v1174 = vadd.f32 0.0, %v1173
        %v1175 = vpop.f32.mrb[0].mxu0
        %v1176 = vadd.f32 0.0, %v1175
        %1177 = vdwg.mxu0
        %v1178 = vmax.f32 %v1170, %v1172
        %1179 = vmax.xlane.f32.xlu0 %v1178
        %v1180 = vpop.xlane.xlu0 %1179
        %v1181 = vmax.f32 %v1174, %v1176
        %1182 = vmax.xlane.f32.xlu0 %v1181
        %v1183 = vpop.xlane.xlu0 %1182
        %v1184 = vsub.f32 %v1170, %v1180
        %v1185 = vsub.f32 %v1172, %v1180
        %v1186 = vsub.f32 %v1174, %v1183
        %v1187 = vsub.f32 %v1176, %v1183
        %v1188 = vmul.f32 %v1184, 1.442695
        %v1189 = vpow.pop %v1188
        %v1190 = vmul.f32 %v1185, 1.442695
        %v1191 = vpow.pop %v1190
        %v1192 = vmul.f32 %v1186, 1.442695
        %v1193 = vpow.pop %v1192
        %v1194 = vmul.f32 %v1187, 1.442695
        %v1195 = vpow.pop %v1194
        %v1196 = vpack.c.bf16 %v1193, %v1189
        %v1197 = vpack.c.bf16 %v1195, %v1191
        %v1198 = vld [vmem:[%s14] sm:$0xf]
        %v1199 = vld [vmem:[%s14 + $0x4] sm:$0xf]
        %v1200 = vld [vmem:[%s14 + $0x8] sm:$0xf]
        %v1201 = vld [vmem:[%s14 + $0xc] sm:$0xf]
        %v1202 = vld [vmem:[%s14 + $0x10] sm:$0xf]
        %v1203 = vld [vmem:[%s14 + $0x14] sm:$0xf]
        %v1204 = vld [vmem:[%s14 + $0x18] sm:$0xf]
        %v1205 = vld [vmem:[%s14 + $0x1c] sm:$0xf]
        %v1206 = vld [vmem:[%s14 + $0x20] sm:$0xf]
        %v1207 = vld [vmem:[%s14 + $0x24] sm:$0xf]
        %v1208 = vld [vmem:[%s14 + $0x28] sm:$0xf]
        %v1209 = vld [vmem:[%s14 + $0x2c] sm:$0xf]
        %v1210 = vld [vmem:[%s14 + $0x30] sm:$0xf]
        %v1211 = vld [vmem:[%s14 + $0x34] sm:$0xf]
        %v1212 = vld [vmem:[%s14 + $0x38] sm:$0xf]
        %v1213 = vld [vmem:[%s14 + $0x3c] sm:$0xf]
        %v1214 = vld [vmem:[%s14 + $0x40] sm:$0xf]
        %v1215 = vld [vmem:[%s14 + $0x44] sm:$0xf]
        %v1216 = vld [vmem:[%s14 + $0x48] sm:$0xf]
        %v1217 = vld [vmem:[%s14 + $0x4c] sm:$0xf]
        %v1218 = vld [vmem:[%s14 + $0x50] sm:$0xf]
        %v1219 = vld [vmem:[%s14 + $0x54] sm:$0xf]
        %v1220 = vld [vmem:[%s14 + $0x58] sm:$0xf]
        %v1221 = vld [vmem:[%s14 + $0x5c] sm:$0xf]
        %v1222 = vld [vmem:[%s14 + $0x60] sm:$0xf]
        %v1223 = vld [vmem:[%s14 + $0x64] sm:$0xf]
        %v1224 = vld [vmem:[%s14 + $0x68] sm:$0xf]
        %v1225 = vld [vmem:[%s14 + $0x6c] sm:$0xf]
        %v1226 = vld [vmem:[%s14 + $0x70] sm:$0xf]
        %v1227 = vld [vmem:[%s14 + $0x74] sm:$0xf]
        %v1228 = vld [vmem:[%s14 + $0x78] sm:$0xf]
        %v1229 = vld [vmem:[%s14 + $0x7c] sm:$0xf]
        %v1262 = vunpack.c.l.b16 %v1198
        %v1263 = vunpack.c.l.b16 %v1199
        %v1264 = vunpack.c.l.b16 %v1200
        %v1265 = vunpack.c.l.b16 %v1201
        %v1266 = vunpack.c.l.b16 %v1202
        %v1267 = vunpack.c.l.b16 %v1203
        %v1268 = vunpack.c.l.b16 %v1204
        %v1269 = vunpack.c.l.b16 %v1205
        %v1270 = vunpack.c.l.b16 %v1206
        %v1271 = vunpack.c.l.b16 %v1207
        %v1272 = vunpack.c.l.b16 %v1208
        %v1273 = vunpack.c.l.b16 %v1209
        %v1274 = vunpack.c.l.b16 %v1210
        %v1275 = vunpack.c.l.b16 %v1211
        %v1276 = vunpack.c.l.b16 %v1212
        %v1277 = vunpack.c.l.b16 %v1213
        %v1278 = vunpack.c.l.b16 %v1214
        %v1279 = vunpack.c.l.b16 %v1215
        %v1280 = vunpack.c.l.b16 %v1216
        %v1281 = vunpack.c.l.b16 %v1217
        %v1282 = vunpack.c.l.b16 %v1218
        %v1283 = vunpack.c.l.b16 %v1219
        %v1284 = vunpack.c.l.b16 %v1220
        %v1285 = vunpack.c.l.b16 %v1221
        %v1286 = vunpack.c.l.b16 %v1222
        %v1287 = vunpack.c.l.b16 %v1223
        %v1288 = vunpack.c.l.b16 %v1224
        %v1289 = vunpack.c.l.b16 %v1225
        %v1290 = vunpack.c.l.b16 %v1226
        %v1291 = vunpack.c.l.b16 %v1227
        %v1292 = vunpack.c.l.b16 %v1228
        %v1293 = vunpack.c.l.b16 %v1229
        %v1294 = vpack.c.b16 %v1263, %v1262
        %v1295 = vpack.c.b16 %v1265, %v1264
        %v1296 = vpack.c.b16 %v1267, %v1266
        %v1297 = vpack.c.b16 %v1269, %v1268
        %v1298 = vpack.c.b16 %v1271, %v1270
        %v1299 = vpack.c.b16 %v1273, %v1272
        %v1300 = vpack.c.b16 %v1275, %v1274
        %v1301 = vpack.c.b16 %v1277, %v1276
        %v1302 = vpack.c.b16 %v1279, %v1278
        %v1303 = vpack.c.b16 %v1281, %v1280
        %v1304 = vpack.c.b16 %v1283, %v1282
        %v1305 = vpack.c.b16 %v1285, %v1284
        %v1306 = vpack.c.b16 %v1287, %v1286
        %v1307 = vpack.c.b16 %v1289, %v1288
        %v1308 = vpack.c.b16 %v1291, %v1290
        %v1309 = vpack.c.b16 %v1293, %v1292
        %v1311 = vsel %vm869, %v1294, 0
        %v1314 = vsel %vm869, %v1295, 0
        %v1317 = vsel %vm869, %v1296, 0
        %v1320 = vsel %vm869, %v1297, 0
        %v1323 = vsel %vm869, %v1298, 0
        %v1326 = vsel %vm869, %v1299, 0
        %v1329 = vsel %vm869, %v1300, 0
        %v1332 = vsel %vm869, %v1301, 0
        %v1335 = vsel %vm869, %v1302, 0
        %v1338 = vsel %vm869, %v1303, 0
        %v1341 = vsel %vm869, %v1304, 0
        %v1344 = vsel %vm869, %v1305, 0
        %v1347 = vsel %vm869, %v1306, 0
        %v1350 = vsel %vm869, %v1307, 0
        %v1353 = vsel %vm869, %v1308, 0
        %v1356 = vsel %vm869, %v1309, 0
        %1358 = vmatprep.subr.bf16.mxu0 0
        %1359 = vmatpush1.bf16.msra.mxu0 %v856
        %1360 = vmatprep.subr.bf16.mxu0 0
        %1361 = vmatpush1.bf16.msra.mxu0 0
        %1362 = vmatprep.subr.bf16.mxu0 0
        %1363 = vmatpush1.bf16.msra.mxu0 0
        %1364 = vmatprep.subr.bf16.mxu0 0
        %1365 = vmatpush1.bf16.msra.mxu0 0
        %1366 = vmatprep.subr.bf16.mxu0 0
        %1367 = vmatpush1.bf16.msra.mxu0 0
        %1368 = vmatprep.subr.bf16.mxu0 0
        %1369 = vmatpush1.bf16.msra.mxu0 0
        %1370 = vmatprep.subr.bf16.mxu0 0
        %1371 = vmatpush1.bf16.msra.mxu0 0
        %1372 = vmatprep.subr.bf16.mxu0 0
        %1373 = vmatpush1.bf16.msra.mxu0 0
        %1374 = vmatprep.subr.bf16.mxu0 0
        %1375 = vmatpush1.bf16.msra.mxu0 0
        %1376 = vmatprep.subr.bf16.mxu0 0
        %1377 = vmatpush1.bf16.msra.mxu0 0
        %1378 = vmatprep.subr.bf16.mxu0 0
        %1379 = vmatpush1.bf16.msra.mxu0 0
        %1380 = vmatprep.subr.bf16.mxu0 0
        %1381 = vmatpush1.bf16.msra.mxu0 0
        %1382 = vmatprep.subr.bf16.mxu0 0
        %1383 = vmatpush1.bf16.msra.mxu0 0
        %1384 = vmatprep.subr.bf16.mxu0 0
        %1385 = vmatpush1.bf16.msra.mxu0 0
        %1386 = vmatprep.subr.bf16.mxu0 0
        %1387 = vmatpush1.bf16.msra.mxu0 0
        %1388 = vmatprep.subr.bf16.mxu0 0
        %1389 = vmatpush1.bf16.msra.mxu0 0
        %1390 = vmatprep.mubr.bf16.mxu0 0
        %1391 = vmatmul.mubr.bf16.gmra.mrb[0].mxu0 %v1311
        %v1392 = vpop.f32.mrb[0].mxu0
        %v1393 = vadd.f32 0.0, %v1392
        %v1394 = vpop.f32.mrb[0].mxu0
        %v1395 = vpop.f32.mrb[0].mxu0
        %v1396 = vadd.f32 0.0, %v1395
        %v1397 = vpop.f32.mrb[0].mxu0
        %1398 = vmatprep.mubr.bf16.mxu0 0
        %1399 = vmatmul.mubr.bf16.gmra.mrb[0].mxu0 %v1314
        %v1400 = vpop.f32.mrb[0].mxu0
        %v1401 = vadd.f32 0.0, %v1400
        %v1402 = vpop.f32.mrb[0].mxu0
        %v1403 = vpop.f32.mrb[0].mxu0
        %v1404 = vadd.f32 0.0, %v1403
        %v1405 = vpop.f32.mrb[0].mxu0
        %1406 = vmatprep.mubr.bf16.mxu0 0
        %1407 = vmatmul.mubr.bf16.gmra.mrb[0].mxu0 %v1317
        %v1408 = vpop.f32.mrb[0].mxu0
        %v1409 = vadd.f32 0.0, %v1408
        %v1410 = vpop.f32.mrb[0].mxu0
        %v1411 = vpop.f32.mrb[0].mxu0
        %v1412 = vadd.f32 0.0, %v1411
        %v1413 = vpop.f32.mrb[0].mxu0
        %1414 = vmatprep.mubr.bf16.mxu0 0
        %1415 = vmatmul.mubr.bf16.gmra.mrb[0].mxu0 %v1320
        %v1416 = vpop.f32.mrb[0].mxu0
        %v1417 = vadd.f32 0.0, %v1416
        %v1418 = vpop.f32.mrb[0].mxu0
        %v1419 = vpop.f32.mrb[0].mxu0
        %v1420 = vadd.f32 0.0, %v1419
        %v1421 = vpop.f32.mrb[0].mxu0
        %1422 = vmatprep.mubr.bf16.mxu0 0
        %1423 = vmatmul.mubr.bf16.gmra.mrb[0].mxu0 %v1323
        %v1424 = vpop.f32.mrb[0].mxu0
        %v1425 = vadd.f32 0.0, %v1424
        %v1426 = vpop.f32.mrb[0].mxu0
        %v1427 = vpop.f32.mrb[0].mxu0
        %v1428 = vadd.f32 0.0, %v1427
        %v1429 = vpop.f32.mrb[0].mxu0
        %1430 = vmatprep.mubr.bf16.mxu0 0
        %1431 = vmatmul.mubr.bf16.gmra.mrb[0].mxu0 %v1326
        %v1432 = vpop.f32.mrb[0].mxu0
        %v1433 = vadd.f32 0.0, %v1432
        %v1434 = vpop.f32.mrb[0].mxu0
        %v1435 = vpop.f32.mrb[0].mxu0
        %v1436 = vadd.f32 0.0, %v1435
        %v1437 = vpop.f32.mrb[0].mxu0
        %1438 = vmatprep.mubr.bf16.mxu0 0
        %1439 = vmatmul.mubr.bf16.gmra.mrb[0].mxu0 %v1329
        %v1440 = vpop.f32.mrb[0].mxu0
        %v1441 = vadd.f32 0.0, %v1440
        %v1442 = vpop.f32.mrb[0].mxu0
        %v1443 = vpop.f32.mrb[0].mxu0
        %v1444 = vadd.f32 0.0, %v1443
        %v1445 = vpop.f32.mrb[0].mxu0
        %1446 = vmatprep.mubr.bf16.mxu0 0
        %1447 = vmatmul.mubr.bf16.gmra.mrb[0].mxu0 %v1332
        %v1448 = vpop.f32.mrb[0].mxu0
        %v1449 = vadd.f32 0.0, %v1448
        %v1450 = vpop.f32.mrb[0].mxu0
        %v1451 = vpop.f32.mrb[0].mxu0
        %v1452 = vadd.f32 0.0, %v1451
        %v1453 = vpop.f32.mrb[0].mxu0
        %1454 = vmatprep.mubr.bf16.mxu0 0
        %1455 = vmatmul.mubr.bf16.gmra.mrb[0].mxu0 %v1335
        %v1456 = vpop.f32.mrb[0].mxu0
        %v1457 = vadd.f32 0.0, %v1456
        %v1458 = vpop.f32.mrb[0].mxu0
        %v1459 = vpop.f32.mrb[0].mxu0
        %v1460 = vadd.f32 0.0, %v1459
        %v1461 = vpop.f32.mrb[0].mxu0
        %1462 = vmatprep.mubr.bf16.mxu0 0
        %1463 = vmatmul.mubr.bf16.gmra.mrb[0].mxu0 %v1338
        %v1464 = vpop.f32.mrb[0].mxu0
        %v1465 = vadd.f32 0.0, %v1464
        %v1466 = vpop.f32.mrb[0].mxu0
        %v1467 = vpop.f32.mrb[0].mxu0
        %v1468 = vadd.f32 0.0, %v1467
        %v1469 = vpop.f32.mrb[0].mxu0
        %1470 = vmatprep.mubr.bf16.mxu0 0
        %1471 = vmatmul.mubr.bf16.gmra.mrb[0].mxu0 %v1341
        %v1472 = vpop.f32.mrb[0].mxu0
        %v1473 = vadd.f32 0.0, %v1472
        %v1474 = vpop.f32.mrb[0].mxu0
        %v1475 = vpop.f32.mrb[0].mxu0
        %v1476 = vadd.f32 0.0, %v1475
        %v1477 = vpop.f32.mrb[0].mxu0
        %1478 = vmatprep.mubr.bf16.mxu0 0
        %1479 = vmatmul.mubr.bf16.gmra.mrb[0].mxu0 %v1344
        %v1480 = vpop.f32.mrb[0].mxu0
        %v1481 = vadd.f32 0.0, %v1480
        %v1482 = vpop.f32.mrb[0].mxu0
        %v1483 = vpop.f32.mrb[0].mxu0
        %v1484 = vadd.f32 0.0, %v1483
        %v1485 = vpop.f32.mrb[0].mxu0
        %1486 = vmatprep.mubr.bf16.mxu0 0
        %1487 = vmatmul.mubr.bf16.gmra.mrb[0].mxu0 %v1347
        %v1488 = vpop.f32.mrb[0].mxu0
        %v1489 = vadd.f32 0.0, %v1488
        %v1490 = vpop.f32.mrb[0].mxu0
        %v1491 = vpop.f32.mrb[0].mxu0
        %v1492 = vadd.f32 0.0, %v1491
        %v1493 = vpop.f32.mrb[0].mxu0
        %1494 = vmatprep.mubr.bf16.mxu0 0
        %1495 = vmatmul.mubr.bf16.gmra.mrb[0].mxu0 %v1350
        %v1496 = vpop.f32.mrb[0].mxu0
        %v1497 = vadd.f32 0.0, %v1496
        %v1498 = vpop.f32.mrb[0].mxu0
        %v1499 = vpop.f32.mrb[0].mxu0
        %v1500 = vadd.f32 0.0, %v1499
        %v1501 = vpop.f32.mrb[0].mxu0
        %1502 = vmatprep.mubr.bf16.mxu0 0
        %1503 = vmatmul.mubr.bf16.gmra.mrb[0].mxu0 %v1353
        %v1504 = vpop.f32.mrb[0].mxu0
        %v1505 = vadd.f32 0.0, %v1504
        %v1506 = vpop.f32.mrb[0].mxu0
        %v1507 = vpop.f32.mrb[0].mxu0
        %v1508 = vadd.f32 0.0, %v1507
        %v1509 = vpop.f32.mrb[0].mxu0
        %1510 = vmatprep.mubr.bf16.mxu0 0
        %1511 = vmatmul.mubr.bf16.gmra.mrb[0].mxu0 %v1356
        %v1512 = vpop.f32.mrb[0].mxu0
        %v1513 = vadd.f32 0.0, %v1512
        %v1514 = vpop.f32.mrb[0].mxu0
        %v1515 = vpop.f32.mrb[0].mxu0
        %v1516 = vadd.f32 0.0, %v1515
        %v1517 = vpop.f32.mrb[0].mxu0
        %1518 = vdwg.mxu0
        %v1519 = vpack.c.bf16 %v1396, %v1393
        %v1520 = vpack.c.bf16 %v1404, %v1401
        %v1521 = vpack.c.bf16 %v1412, %v1409
        %v1522 = vpack.c.bf16 %v1420, %v1417
        %v1523 = vpack.c.bf16 %v1428, %v1425
        %v1524 = vpack.c.bf16 %v1436, %v1433
        %v1525 = vpack.c.bf16 %v1444, %v1441
        %v1526 = vpack.c.bf16 %v1452, %v1449
        %v1527 = vpack.c.bf16 %v1460, %v1457
        %v1528 = vpack.c.bf16 %v1468, %v1465
        %v1529 = vpack.c.bf16 %v1476, %v1473
        %v1530 = vpack.c.bf16 %v1484, %v1481
        %v1531 = vpack.c.bf16 %v1492, %v1489
        %v1532 = vpack.c.bf16 %v1500, %v1497
        %v1533 = vpack.c.bf16 %v1508, %v1505
        %v1534 = vpack.c.bf16 %v1516, %v1513
        %v1535 = vld [vmem:[%s16] sm:$0xf]
        %v1536 = vld [vmem:[%s16 + $0x4] sm:$0xf]
        %v1537 = vld [vmem:[%s16 + $0x8] sm:$0xf]
        %v1538 = vld [vmem:[%s16 + $0xc] sm:$0xf]
        %v1539 = vld [vmem:[%s16 + $0x10] sm:$0xf]
        %v1540 = vld [vmem:[%s16 + $0x14] sm:$0xf]
        %v1541 = vld [vmem:[%s16 + $0x18] sm:$0xf]
        %v1542 = vld [vmem:[%s16 + $0x1c] sm:$0xf]
        %v1543 = vld [vmem:[%s16 + $0x20] sm:$0xf]
        %v1544 = vld [vmem:[%s16 + $0x24] sm:$0xf]
        %v1545 = vld [vmem:[%s16 + $0x28] sm:$0xf]
        %v1546 = vld [vmem:[%s16 + $0x2c] sm:$0xf]
        %v1547 = vld [vmem:[%s16 + $0x30] sm:$0xf]
        %v1548 = vld [vmem:[%s16 + $0x34] sm:$0xf]
        %v1549 = vld [vmem:[%s16 + $0x38] sm:$0xf]
        %v1550 = vld [vmem:[%s16 + $0x3c] sm:$0xf]
        %v1551 = vld [vmem:[%s16 + $0x40] sm:$0xf]
        %v1552 = vld [vmem:[%s16 + $0x44] sm:$0xf]
        %v1553 = vld [vmem:[%s16 + $0x48] sm:$0xf]
        %v1554 = vld [vmem:[%s16 + $0x4c] sm:$0xf]
        %v1555 = vld [vmem:[%s16 + $0x50] sm:$0xf]
        %v1556 = vld [vmem:[%s16 + $0x54] sm:$0xf]
        %v1557 = vld [vmem:[%s16 + $0x58] sm:$0xf]
        %v1558 = vld [vmem:[%s16 + $0x5c] sm:$0xf]
        %v1559 = vld [vmem:[%s16 + $0x60] sm:$0xf]
        %v1560 = vld [vmem:[%s16 + $0x64] sm:$0xf]
        %v1561 = vld [vmem:[%s16 + $0x68] sm:$0xf]
        %v1562 = vld [vmem:[%s16 + $0x6c] sm:$0xf]
        %v1563 = vld [vmem:[%s16 + $0x70] sm:$0xf]
        %v1564 = vld [vmem:[%s16 + $0x74] sm:$0xf]
        %v1565 = vld [vmem:[%s16 + $0x78] sm:$0xf]
        %v1566 = vld [vmem:[%s16 + $0x7c] sm:$0xf]
        %v1599 = vunpack.c.l.b16 %v1535
        %v1600 = vunpack.c.l.b16 %v1536
        %v1601 = vunpack.c.l.b16 %v1537
        %v1602 = vunpack.c.l.b16 %v1538
        %v1603 = vunpack.c.l.b16 %v1539
        %v1604 = vunpack.c.l.b16 %v1540
        %v1605 = vunpack.c.l.b16 %v1541
        %v1606 = vunpack.c.l.b16 %v1542
        %v1607 = vunpack.c.l.b16 %v1543
        %v1608 = vunpack.c.l.b16 %v1544
        %v1609 = vunpack.c.l.b16 %v1545
        %v1610 = vunpack.c.l.b16 %v1546
        %v1611 = vunpack.c.l.b16 %v1547
        %v1612 = vunpack.c.l.b16 %v1548
        %v1613 = vunpack.c.l.b16 %v1549
        %v1614 = vunpack.c.l.b16 %v1550
        %v1615 = vunpack.c.l.b16 %v1551
        %v1616 = vunpack.c.l.b16 %v1552
        %v1617 = vunpack.c.l.b16 %v1553
        %v1618 = vunpack.c.l.b16 %v1554
        %v1619 = vunpack.c.l.b16 %v1555
        %v1620 = vunpack.c.l.b16 %v1556
        %v1621 = vunpack.c.l.b16 %v1557
        %v1622 = vunpack.c.l.b16 %v1558
        %v1623 = vunpack.c.l.b16 %v1559
        %v1624 = vunpack.c.l.b16 %v1560
        %v1625 = vunpack.c.l.b16 %v1561
        %v1626 = vunpack.c.l.b16 %v1562
        %v1627 = vunpack.c.l.b16 %v1563
        %v1628 = vunpack.c.l.b16 %v1564
        %v1629 = vunpack.c.l.b16 %v1565
        %v1630 = vunpack.c.l.b16 %v1566
        %v1631 = vpack.c.b16 %v1600, %v1599
        %v1632 = vpack.c.b16 %v1602, %v1601
        %v1633 = vpack.c.b16 %v1604, %v1603
        %v1634 = vpack.c.b16 %v1606, %v1605
        %v1635 = vpack.c.b16 %v1608, %v1607
        %v1636 = vpack.c.b16 %v1610, %v1609
        %v1637 = vpack.c.b16 %v1612, %v1611
        %v1638 = vpack.c.b16 %v1614, %v1613
        %v1639 = vpack.c.b16 %v1616, %v1615
        %v1640 = vpack.c.b16 %v1618, %v1617
        %v1641 = vpack.c.b16 %v1620, %v1619
        %v1642 = vpack.c.b16 %v1622, %v1621
        %v1643 = vpack.c.b16 %v1624, %v1623
        %v1644 = vpack.c.b16 %v1626, %v1625
        %v1645 = vpack.c.b16 %v1628, %v1627
        %v1646 = vpack.c.b16 %v1630, %v1629
        %v1663 = vmul.bf16 %v1519, %v1631
        %v1664 = vmul.bf16 %v1520, %v1632
        %v1665 = vmul.bf16 %v1521, %v1633
        %v1666 = vmul.bf16 %v1522, %v1634
        %v1667 = vmul.bf16 %v1523, %v1635
        %v1668 = vmul.bf16 %v1524, %v1636
        %v1669 = vmul.bf16 %v1525, %v1637
        %v1670 = vmul.bf16 %v1526, %v1638
        %v1671 = vmul.bf16 %v1527, %v1639
        %v1672 = vmul.bf16 %v1528, %v1640
        %v1673 = vmul.bf16 %v1529, %v1641
        %v1674 = vmul.bf16 %v1530, %v1642
        %v1675 = vmul.bf16 %v1531, %v1643
        %v1676 = vmul.bf16 %v1532, %v1644
        %v1677 = vmul.bf16 %v1533, %v1645
        %v1678 = vmul.bf16 %v1534, %v1646
        %1679 = vmatprep.subr.bf16.mxu0 0
        %1680 = vmatpush1.bf16.msra.mxu0 %v1663
        %1681 = vmatprep.subr.bf16.mxu0 0
        %1682 = vmatpush1.bf16.msra.mxu0 %v1664
        %1683 = vmatprep.subr.bf16.mxu0 0
        %1684 = vmatpush1.bf16.msra.mxu0 %v1665
        %1685 = vmatprep.subr.bf16.mxu0 0
        %1686 = vmatpush1.bf16.msra.mxu0 %v1666
        %1687 = vmatprep.subr.bf16.mxu0 0
        %1688 = vmatpush1.bf16.msra.mxu0 %v1667
        %1689 = vmatprep.subr.bf16.mxu0 0
        %1690 = vmatpush1.bf16.msra.mxu0 %v1668
        %1691 = vmatprep.subr.bf16.mxu0 0
        %1692 = vmatpush1.bf16.msra.mxu0 %v1669
        %1693 = vmatprep.subr.bf16.mxu0 0
        %1694 = vmatpush1.bf16.msra.mxu0 %v1670
        %1695 = vmatprep.subr.bf16.mxu0 0
        %1696 = vmatpush1.bf16.msra.mxu0 %v1671
        %1697 = vmatprep.subr.bf16.mxu0 0
        %1698 = vmatpush1.bf16.msra.mxu0 %v1672
        %1699 = vmatprep.subr.bf16.mxu0 0
        %1700 = vmatpush1.bf16.msra.mxu0 %v1673
        %1701 = vmatprep.subr.bf16.mxu0 0
        %1702 = vmatpush1.bf16.msra.mxu0 %v1674
        %1703 = vmatprep.subr.bf16.mxu0 0
        %1704 = vmatpush1.bf16.msra.mxu0 %v1675
        %1705 = vmatprep.subr.bf16.mxu0 0
        %1706 = vmatpush1.bf16.msra.mxu0 %v1676
        %1707 = vmatprep.subr.bf16.mxu0 0
        %1708 = vmatpush1.bf16.msra.mxu0 %v1677
        %1709 = vmatprep.subr.bf16.mxu0 0
        %1710 = vmatpush1.bf16.msra.mxu0 %v1678
        %1711 = vmatprep.mubr.bf16.mxu0 %v1197
        %1712 = vmatmul.mubr.bf16.gmra.mrb[0].mxu0 %v1196
        %v1713 = vpop.f32.mrb[0].mxu0
        %v1714 = vadd.f32 0.0, %v1713
        %v1715 = vpop.f32.mrb[0].mxu0
        %v1716 = vpop.f32.mrb[0].mxu0
        %v1717 = vadd.f32 0.0, %v1716
        %v1718 = vpop.f32.mrb[0].mxu0
        %1719 = vdwg.mxu0
        %1720 = vmatprep.subr.bf16.mxu0 0
        %1721 = vmatpush1.bf16.msra.mxu0 %v1631
        %1722 = vmatprep.subr.bf16.mxu0 0
        %1723 = vmatpush1.bf16.msra.mxu0 %v1632
        %1724 = vmatprep.subr.bf16.mxu0 0
        %1725 = vmatpush1.bf16.msra.mxu0 %v1633
        %1726 = vmatprep.subr.bf16.mxu0 0
        %1727 = vmatpush1.bf16.msra.mxu0 %v1634
        %1728 = vmatprep.subr.bf16.mxu0 0
        %1729 = vmatpush1.bf16.msra.mxu0 %v1635
        %1730 = vmatprep.subr.bf16.mxu0 0
        %1731 = vmatpush1.bf16.msra.mxu0 %v1636
        %1732 = vmatprep.subr.bf16.mxu0 0
        %1733 = vmatpush1.bf16.msra.mxu0 %v1637
        %1734 = vmatprep.subr.bf16.mxu0 0
        %1735 = vmatpush1.bf16.msra.mxu0 %v1638
        %1736 = vmatprep.subr.bf16.mxu0 0
        %1737 = vmatpush1.bf16.msra.mxu0 %v1639
        %1738 = vmatprep.subr.bf16.mxu0 0
        %1739 = vmatpush1.bf16.msra.mxu0 %v1640
        %1740 = vmatprep.subr.bf16.mxu0 0
        %1741 = vmatpush1.bf16.msra.mxu0 %v1641
        %1742 = vmatprep.subr.bf16.mxu0 0
        %1743 = vmatpush1.bf16.msra.mxu0 %v1642
        %1744 = vmatprep.subr.bf16.mxu0 0
        %1745 = vmatpush1.bf16.msra.mxu0 %v1643
        %1746 = vmatprep.subr.bf16.mxu0 0
        %1747 = vmatpush1.bf16.msra.mxu0 %v1644
        %1748 = vmatprep.subr.bf16.mxu0 0
        %1749 = vmatpush1.bf16.msra.mxu0 %v1645
        %1750 = vmatprep.subr.bf16.mxu0 0
        %1751 = vmatpush1.bf16.msra.mxu0 %v1646
        %1752 = vmatprep.mubr.bf16.mxu0 %v1197
        %1753 = vmatmul.mubr.bf16.gmra.mrb[0].mxu0 %v1196
        %v1754 = vpop.f32.mrb[0].mxu0
        %v1755 = vadd.f32 0.0, %v1754
        %v1756 = vpop.f32.mrb[0].mxu0
        %v1757 = vpop.f32.mrb[0].mxu0
        %v1758 = vadd.f32 0.0, %v1757
        %v1759 = vpop.f32.mrb[0].mxu0
        %1760 = vdwg.mxu0
        %v1761 = vmax.f32 %v1755, 1e-30
        %v1762 = vmax.f32 %v1758, 1e-30
        %v1763 = vrcp.pop %v1761
        %v1764 = vrcp.pop %v1762
        %v1765 = vmul.f32 %v1714, %v1763
        %v1766 = vmul.f32 %v1717, %v1764
        %v1767 = vpack.c.bf16 %v1766, %v1765
        %v1768 = vld [vmem:[%s3] sm:$0xf]
        %v1769 = vld [vmem:[%s3 + $0x4] sm:$0xf]
        %v1770 = vld [vmem:[%s3 + $0x8] sm:$0xf]
        %v1771 = vld [vmem:[%s3 + $0xc] sm:$0xf]
        %v1772 = vld [vmem:[%s3 + $0x10] sm:$0xf]
        %v1773 = vld [vmem:[%s3 + $0x14] sm:$0xf]
        %v1774 = vld [vmem:[%s3 + $0x18] sm:$0xf]
        %v1775 = vld [vmem:[%s3 + $0x1c] sm:$0xf]
        %v1776 = vld [vmem:[%s3 + $0x20] sm:$0xf]
        %v1777 = vld [vmem:[%s3 + $0x24] sm:$0xf]
        %v1778 = vld [vmem:[%s3 + $0x28] sm:$0xf]
        %v1779 = vld [vmem:[%s3 + $0x2c] sm:$0xf]
        %v1780 = vld [vmem:[%s3 + $0x30] sm:$0xf]
        %v1781 = vld [vmem:[%s3 + $0x34] sm:$0xf]
        %v1782 = vld [vmem:[%s3 + $0x38] sm:$0xf]
        %v1783 = vld [vmem:[%s3 + $0x3c] sm:$0xf]
        %v1784 = vld [vmem:[%s4] sm:$0x1]
        %v1786 = vlaneseq
        %v1787 = vshrl.u32 %v1786, 7
        %v1788 = vsub.s32 0, %v1787
        %v1789 = vrot.slane %v1784, %v1788
        %v1807 = vunpack.c.l.b16 %v1768
        %v1808 = vunpack.c.l.b16 %v1769
        %v1809 = vunpack.c.l.b16 %v1770
        %v1810 = vunpack.c.l.b16 %v1771
        %v1811 = vunpack.c.l.b16 %v1772
        %v1812 = vunpack.c.l.b16 %v1773
        %v1813 = vunpack.c.l.b16 %v1774
        %v1814 = vunpack.c.l.b16 %v1775
        %v1815 = vunpack.c.l.b16 %v1776
        %v1816 = vunpack.c.l.b16 %v1777
        %v1817 = vunpack.c.l.b16 %v1778
        %v1818 = vunpack.c.l.b16 %v1779
        %v1819 = vunpack.c.l.b16 %v1780
        %v1820 = vunpack.c.l.b16 %v1781
        %v1821 = vunpack.c.l.b16 %v1782
        %v1822 = vunpack.c.l.b16 %v1783
        %v1823 = vpack.c.b16 %v1808, %v1807
        %v1824 = vpack.c.b16 %v1810, %v1809
        %v1825 = vpack.c.b16 %v1812, %v1811
        %v1826 = vpack.c.b16 %v1814, %v1813
        %v1827 = vpack.c.b16 %v1816, %v1815
        %v1828 = vpack.c.b16 %v1818, %v1817
        %v1829 = vpack.c.b16 %v1820, %v1819
        %v1830 = vpack.c.b16 %v1822, %v1821
        %1839 = vmatprep.subr.bf16.mxu0 0
        %1840 = vmatpush1.bf16.msra.mxu0 %v1823
        %1841 = vmatprep.subr.bf16.mxu0 0
        %1842 = vmatpush1.bf16.msra.mxu0 %v1824
        %1843 = vmatprep.subr.bf16.mxu0 0
        %1844 = vmatpush1.bf16.msra.mxu0 %v1825
        %1845 = vmatprep.subr.bf16.mxu0 0
        %1846 = vmatpush1.bf16.msra.mxu0 %v1826
        %1847 = vmatprep.subr.bf16.mxu0 0
        %1848 = vmatpush1.bf16.msra.mxu0 %v1827
        %1849 = vmatprep.subr.bf16.mxu0 0
        %1850 = vmatpush1.bf16.msra.mxu0 %v1828
        %1851 = vmatprep.subr.bf16.mxu0 0
        %1852 = vmatpush1.bf16.msra.mxu0 %v1829
        %1853 = vmatprep.subr.bf16.mxu0 0
        %1854 = vmatpush1.bf16.msra.mxu0 %v1830
        %1855 = vmatprep.subr.bf16.mxu0 0
        %1856 = vmatpush1.bf16.msra.mxu0 0
        %1857 = vmatprep.subr.bf16.mxu0 0
        %1858 = vmatpush1.bf16.msra.mxu0 0
        %1859 = vmatprep.subr.bf16.mxu0 0
        %1860 = vmatpush1.bf16.msra.mxu0 0
        %1861 = vmatprep.subr.bf16.mxu0 0
        %1862 = vmatpush1.bf16.msra.mxu0 0
        %1863 = vmatprep.subr.bf16.mxu0 0
        %1864 = vmatpush1.bf16.msra.mxu0 0
        %1865 = vmatprep.subr.bf16.mxu0 0
        %1866 = vmatpush1.bf16.msra.mxu0 0
        %1867 = vmatprep.subr.bf16.mxu0 0
        %1868 = vmatpush1.bf16.msra.mxu0 0
        %1869 = vmatprep.subr.bf16.mxu0 0
        %1870 = vmatpush1.bf16.msra.mxu0 0
        %1871 = vmatprep.mubr.bf16.mxu0 0
        %1872 = vmatmul.mubr.bf16.gmra.mrb[0].mxu0 %v1767
        %v1873 = vpop.f32.mrb[0].mxu0
        %v1874 = vadd.f32 %v1789, %v1873
        %v1875 = vpop.f32.mrb[0].mxu0
        %v1876 = vpop.f32.mrb[0].mxu0
        %v1877 = vadd.f32 %v1789, %v1876
        %v1878 = vpop.f32.mrb[0].mxu0
        %1879 = vdwg.mxu0
        %v1880 = vadd.f32 %v551, %v1874
        %v1881 = vadd.f32 %v552, %v1877
        %v1882 = vld [vmem:[%s5] sm:$0x1]
        %v1883 = vld [vmem:[%s6] sm:$0x1]
        %1884 = vadd.xlane.f32.xlu0 %v1880
        %v1885 = vpop.xlane.xlu0 %1884
        %1886 = vadd.xlane.f32.xlu0 %v1881
        %v1887 = vpop.xlane.xlu0 %1886
        %v1888 = vrcp.pop 128.0
        %v1889 = vmul.f32 %v1885, %v1888
        %v1890 = vmul.f32 %v1887, %v1888
        %v1891 = vsub.f32 %v1880, %v1889
        %v1892 = vsub.f32 %v1881, %v1890
        %v1893 = vmul.f32 %v1891, %v1891
        %v1894 = vmul.f32 %v1892, %v1892
        %1895 = vadd.xlane.f32.xlu0 %v1893
        %v1896 = vpop.xlane.xlu0 %1895
        %1897 = vadd.xlane.f32.xlu0 %v1894
        %v1898 = vpop.xlane.xlu0 %1897
        %v1899 = vmul.f32 %v1896, %v1888
        %v1900 = vmul.f32 %v1898, %v1888
        %v1901 = vadd.f32 %v1899, 1e-12
        %v1902 = vadd.f32 %v1900, 1e-12
        %v1903 = vrsqrt.pop %v1901
        %v1904 = vrsqrt.pop %v1902
        %v1905 = vmul.f32 %v1891, %v1903
        %v1906 = vmul.f32 %v1892, %v1904
        %v1908 = vlaneseq
        %v1909 = vshrl.u32 %v1908, 7
        %v1910 = vsub.s32 0, %v1909
        %v1911 = vrot.slane %v1882, %v1910
        %v1913 = vmul.f32 %v1905, %v1911
        %v1914 = vmul.f32 %v1906, %v1911
        %v1916 = vlaneseq
        %v1917 = vshrl.u32 %v1916, 7
        %v1918 = vsub.s32 0, %v1917
        %v1919 = vrot.slane %v1883, %v1918
        %v1921 = vadd.f32 %v1913, %v1919
        %v1922 = vadd.f32 %v1914, %v1919
        %v1923 = vpack.c.bf16 %v1922, %v1921
        %v1924 = vld [vmem:[%s7] sm:$0xff]
        %v1925 = vld [vmem:[%s7 + $0x8] sm:$0xff]
        %v1926 = vld [vmem:[%s7 + $0x10] sm:$0xff]
        %v1927 = vld [vmem:[%s7 + $0x18] sm:$0xff]
        %v1928 = vld [vmem:[%s7 + $0x20] sm:$0xff]
        %v1929 = vld [vmem:[%s7 + $0x28] sm:$0xff]
        %v1930 = vld [vmem:[%s7 + $0x30] sm:$0xff]
        %v1931 = vld [vmem:[%s7 + $0x38] sm:$0xff]
        %v1932 = vld [vmem:[%s7 + $0x40] sm:$0xff]
        %v1933 = vld [vmem:[%s7 + $0x48] sm:$0xff]
        %v1934 = vld [vmem:[%s7 + $0x50] sm:$0xff]
        %v1935 = vld [vmem:[%s7 + $0x58] sm:$0xff]
        %v1936 = vld [vmem:[%s7 + $0x60] sm:$0xff]
        %v1937 = vld [vmem:[%s7 + $0x68] sm:$0xff]
        %v1938 = vld [vmem:[%s7 + $0x70] sm:$0xff]
        %v1939 = vld [vmem:[%s7 + $0x78] sm:$0xff]
        %v1940 = vld [vmem:[%s8] sm:$0x3]
        %v1942 = vlaneseq
        %v1943 = vshrl.u32 %v1942, 7
        %v1944 = vsub.s32 0, %v1943
        %v1945 = vrot.slane %v1940, %v1944
        %v1946 = vlaneseq
        %v1947 = vshrl.u32 %v1946, 7
        %v1948 = vsub.s32 1, %v1947
        %v1949 = vrot.slane %v1940, %v1948
        %v1968 = vunpack.c.l.b16 %v1924
        %v1969 = vunpack.c.h.b16 %v1924
        %v1970 = vunpack.c.l.b16 %v1925
        %v1971 = vunpack.c.h.b16 %v1925
        %v1972 = vunpack.c.l.b16 %v1926
        %v1973 = vunpack.c.h.b16 %v1926
        %v1974 = vunpack.c.l.b16 %v1927
        %v1975 = vunpack.c.h.b16 %v1927
        %v1976 = vunpack.c.l.b16 %v1928
        %v1977 = vunpack.c.h.b16 %v1928
        %v1978 = vunpack.c.l.b16 %v1929
        %v1979 = vunpack.c.h.b16 %v1929
        %v1980 = vunpack.c.l.b16 %v1930
        %v1981 = vunpack.c.h.b16 %v1930
        %v1982 = vunpack.c.l.b16 %v1931
        %v1983 = vunpack.c.h.b16 %v1931
        %v1984 = vunpack.c.l.b16 %v1932
        %v1985 = vunpack.c.h.b16 %v1932
        %v1986 = vunpack.c.l.b16 %v1933
        %v1987 = vunpack.c.h.b16 %v1933
        %v1988 = vunpack.c.l.b16 %v1934
        %v1989 = vunpack.c.h.b16 %v1934
        %v1990 = vunpack.c.l.b16 %v1935
        %v1991 = vunpack.c.h.b16 %v1935
        %v1992 = vunpack.c.l.b16 %v1936
        %v1993 = vunpack.c.h.b16 %v1936
        %v1994 = vunpack.c.l.b16 %v1937
        %v1995 = vunpack.c.h.b16 %v1937
        %v1996 = vunpack.c.l.b16 %v1938
        %v1997 = vunpack.c.h.b16 %v1938
        %v1998 = vunpack.c.l.b16 %v1939
        %v1999 = vunpack.c.h.b16 %v1939
        %v2000 = vpack.c.b16 %v1970, %v1968
        %v2001 = vpack.c.b16 %v1971, %v1969
        %v2002 = vpack.c.b16 %v1974, %v1972
        %v2003 = vpack.c.b16 %v1975, %v1973
        %v2004 = vpack.c.b16 %v1978, %v1976
        %v2005 = vpack.c.b16 %v1979, %v1977
        %v2006 = vpack.c.b16 %v1982, %v1980
        %v2007 = vpack.c.b16 %v1983, %v1981
        %v2008 = vpack.c.b16 %v1986, %v1984
        %v2009 = vpack.c.b16 %v1987, %v1985
        %v2010 = vpack.c.b16 %v1990, %v1988
        %v2011 = vpack.c.b16 %v1991, %v1989
        %v2012 = vpack.c.b16 %v1994, %v1992
        %v2013 = vpack.c.b16 %v1995, %v1993
        %v2014 = vpack.c.b16 %v1998, %v1996
        %v2015 = vpack.c.b16 %v1999, %v1997
        %2032 = vmatprep.subr.bf16.mxu0 %v2001
        %2033 = vmatpush1.bf16.msra.mxu0 %v2000
        %2034 = vmatprep.subr.bf16.mxu0 %v2003
        %2035 = vmatpush1.bf16.msra.mxu0 %v2002
        %2036 = vmatprep.subr.bf16.mxu0 %v2005
        %2037 = vmatpush1.bf16.msra.mxu0 %v2004
        %2038 = vmatprep.subr.bf16.mxu0 %v2007
        %2039 = vmatpush1.bf16.msra.mxu0 %v2006
        %2040 = vmatprep.subr.bf16.mxu0 %v2009
        %2041 = vmatpush1.bf16.msra.mxu0 %v2008
        %2042 = vmatprep.subr.bf16.mxu0 %v2011
        %2043 = vmatpush1.bf16.msra.mxu0 %v2010
        %2044 = vmatprep.subr.bf16.mxu0 %v2013
        %2045 = vmatpush1.bf16.msra.mxu0 %v2012
        %2046 = vmatprep.subr.bf16.mxu0 %v2015
        %2047 = vmatpush1.bf16.msra.mxu0 %v2014
        %2048 = vmatprep.subr.bf16.mxu0 0
        %2049 = vmatpush1.bf16.msra.mxu0 0
        %2050 = vmatprep.subr.bf16.mxu0 0
        %2051 = vmatpush1.bf16.msra.mxu0 0
        %2052 = vmatprep.subr.bf16.mxu0 0
        %2053 = vmatpush1.bf16.msra.mxu0 0
        %2054 = vmatprep.subr.bf16.mxu0 0
        %2055 = vmatpush1.bf16.msra.mxu0 0
        %2056 = vmatprep.subr.bf16.mxu0 0
        %2057 = vmatpush1.bf16.msra.mxu0 0
        %2058 = vmatprep.subr.bf16.mxu0 0
        %2059 = vmatpush1.bf16.msra.mxu0 0
        %2060 = vmatprep.subr.bf16.mxu0 0
        %2061 = vmatpush1.bf16.msra.mxu0 0
        %2062 = vmatprep.subr.bf16.mxu0 0
        %2063 = vmatpush1.bf16.msra.mxu0 0
        %2064 = vmatprep.mubr.bf16.mxu0 0
        %2065 = vmatmul.mubr.bf16.gmra.mrb[0].mxu0 %v1923
        %v2066 = vpop.f32.mrb[0].mxu0
        %v2067 = vadd.f32 %v1945, %v2066
        %v2068 = vpop.f32.mrb[0].mxu0
        %v2069 = vadd.f32 %v1949, %v2068
        %v2070 = vpop.f32.mrb[0].mxu0
        %v2071 = vadd.f32 %v1945, %v2070
        %v2072 = vpop.f32.mrb[0].mxu0
        %v2073 = vadd.f32 %v1949, %v2072
        %2074 = vdwg.mxu0
        %v2075 = vmul.f32 %v2067, 0.5
        %v2076 = vmul.f32 %v2069, 0.5
        %v2077 = vmul.f32 %v2071, 0.5
        %v2078 = vmul.f32 %v2073, 0.5
        %v2079 = vmul.f32 %v2067, 0.044715
        %v2080 = vmul.f32 %v2069, 0.044715
        %v2081 = vmul.f32 %v2071, 0.044715
        %v2082 = vmul.f32 %v2073, 0.044715
        %v2083 = vmul.f32 %v2079, %v2067
        %v2084 = vmul.f32 %v2080, %v2069
        %v2085 = vmul.f32 %v2081, %v2071
        %v2086 = vmul.f32 %v2082, %v2073
        %v2087 = vmul.f32 %v2083, %v2067
        %v2088 = vmul.f32 %v2084, %v2069
        %v2089 = vmul.f32 %v2085, %v2071
        %v2090 = vmul.f32 %v2086, %v2073
        %v2091 = vadd.f32 %v2067, %v2087
        %v2092 = vadd.f32 %v2069, %v2088
        %v2093 = vadd.f32 %v2071, %v2089
        %v2094 = vadd.f32 %v2073, %v2090
        %v2095 = vmul.f32 %v2091, 0.7978846
        %v2096 = vmul.f32 %v2092, 0.7978846
        %v2097 = vmul.f32 %v2093, 0.7978846
        %v2098 = vmul.f32 %v2094, 0.7978846
        %v2099 = vtanh.pop %v2095
        %v2100 = vtanh.pop %v2096
        %v2101 = vtanh.pop %v2097
        %v2102 = vtanh.pop %v2098
        %v2103 = vadd.f32 %v2099, 1.0
        %v2104 = vadd.f32 %v2100, 1.0
        %v2105 = vadd.f32 %v2101, 1.0
        %v2106 = vadd.f32 %v2102, 1.0
        %v2107 = vmul.f32 %v2075, %v2103
        %v2108 = vmul.f32 %v2076, %v2104
        %v2109 = vmul.f32 %v2077, %v2105
        %v2110 = vmul.f32 %v2078, %v2106
        %v2111 = vpack.c.bf16 %v2109, %v2107
        %v2112 = vpack.c.bf16 %v2110, %v2108
        %v2113 = vld [vmem:[%s9] sm:$0xf]
        %v2114 = vld [vmem:[%s9 + $0x4] sm:$0xf]
        %v2115 = vld [vmem:[%s9 + $0x8] sm:$0xf]
        %v2116 = vld [vmem:[%s9 + $0xc] sm:$0xf]
        %v2117 = vld [vmem:[%s9 + $0x10] sm:$0xf]
        %v2118 = vld [vmem:[%s9 + $0x14] sm:$0xf]
        %v2119 = vld [vmem:[%s9 + $0x18] sm:$0xf]
        %v2120 = vld [vmem:[%s9 + $0x1c] sm:$0xf]
        %v2121 = vld [vmem:[%s9 + $0x20] sm:$0xf]
        %v2122 = vld [vmem:[%s9 + $0x24] sm:$0xf]
        %v2123 = vld [vmem:[%s9 + $0x28] sm:$0xf]
        %v2124 = vld [vmem:[%s9 + $0x2c] sm:$0xf]
        %v2125 = vld [vmem:[%s9 + $0x30] sm:$0xf]
        %v2126 = vld [vmem:[%s9 + $0x34] sm:$0xf]
        %v2127 = vld [vmem:[%s9 + $0x38] sm:$0xf]
        %v2128 = vld [vmem:[%s9 + $0x3c] sm:$0xf]
        %v2129 = vld [vmem:[%s9 + $0x40] sm:$0xf]
        %v2130 = vld [vmem:[%s9 + $0x44] sm:$0xf]
        %v2131 = vld [vmem:[%s9 + $0x48] sm:$0xf]
        %v2132 = vld [vmem:[%s9 + $0x4c] sm:$0xf]
        %v2133 = vld [vmem:[%s9 + $0x50] sm:$0xf]
        %v2134 = vld [vmem:[%s9 + $0x54] sm:$0xf]
        %v2135 = vld [vmem:[%s9 + $0x58] sm:$0xf]
        %v2136 = vld [vmem:[%s9 + $0x5c] sm:$0xf]
        %v2137 = vld [vmem:[%s9 + $0x60] sm:$0xf]
        %v2138 = vld [vmem:[%s9 + $0x64] sm:$0xf]
        %v2139 = vld [vmem:[%s9 + $0x68] sm:$0xf]
        %v2140 = vld [vmem:[%s9 + $0x6c] sm:$0xf]
        %v2141 = vld [vmem:[%s9 + $0x70] sm:$0xf]
        %v2142 = vld [vmem:[%s9 + $0x74] sm:$0xf]
        %v2143 = vld [vmem:[%s9 + $0x78] sm:$0xf]
        %v2144 = vld [vmem:[%s9 + $0x7c] sm:$0xf]
        %v2145 = vld [vmem:[%s10] sm:$0x1]
        %v2147 = vlaneseq
        %v2148 = vshrl.u32 %v2147, 7
        %v2149 = vsub.s32 0, %v2148
        %v2150 = vrot.slane %v2145, %v2149
        %v2184 = vunpack.c.l.b16 %v2113
        %v2185 = vunpack.c.l.b16 %v2114
        %v2186 = vunpack.c.l.b16 %v2115
        %v2187 = vunpack.c.l.b16 %v2116
        %v2188 = vunpack.c.l.b16 %v2117
        %v2189 = vunpack.c.l.b16 %v2118
        %v2190 = vunpack.c.l.b16 %v2119
        %v2191 = vunpack.c.l.b16 %v2120
        %v2192 = vunpack.c.l.b16 %v2121
        %v2193 = vunpack.c.l.b16 %v2122
        %v2194 = vunpack.c.l.b16 %v2123
        %v2195 = vunpack.c.l.b16 %v2124
        %v2196 = vunpack.c.l.b16 %v2125
        %v2197 = vunpack.c.l.b16 %v2126
        %v2198 = vunpack.c.l.b16 %v2127
        %v2199 = vunpack.c.l.b16 %v2128
        %v2200 = vunpack.c.l.b16 %v2129
        %v2201 = vunpack.c.l.b16 %v2130
        %v2202 = vunpack.c.l.b16 %v2131
        %v2203 = vunpack.c.l.b16 %v2132
        %v2204 = vunpack.c.l.b16 %v2133
        %v2205 = vunpack.c.l.b16 %v2134
        %v2206 = vunpack.c.l.b16 %v2135
        %v2207 = vunpack.c.l.b16 %v2136
        %v2208 = vunpack.c.l.b16 %v2137
        %v2209 = vunpack.c.l.b16 %v2138
        %v2210 = vunpack.c.l.b16 %v2139
        %v2211 = vunpack.c.l.b16 %v2140
        %v2212 = vunpack.c.l.b16 %v2141
        %v2213 = vunpack.c.l.b16 %v2142
        %v2214 = vunpack.c.l.b16 %v2143
        %v2215 = vunpack.c.l.b16 %v2144
        %v2216 = vpack.c.b16 %v2185, %v2184
        %v2217 = vpack.c.b16 %v2187, %v2186
        %v2218 = vpack.c.b16 %v2189, %v2188
        %v2219 = vpack.c.b16 %v2191, %v2190
        %v2220 = vpack.c.b16 %v2193, %v2192
        %v2221 = vpack.c.b16 %v2195, %v2194
        %v2222 = vpack.c.b16 %v2197, %v2196
        %v2223 = vpack.c.b16 %v2199, %v2198
        %v2224 = vpack.c.b16 %v2201, %v2200
        %v2225 = vpack.c.b16 %v2203, %v2202
        %v2226 = vpack.c.b16 %v2205, %v2204
        %v2227 = vpack.c.b16 %v2207, %v2206
        %v2228 = vpack.c.b16 %v2209, %v2208
        %v2229 = vpack.c.b16 %v2211, %v2210
        %v2230 = vpack.c.b16 %v2213, %v2212
        %v2231 = vpack.c.b16 %v2215, %v2214
        %2248 = vmatprep.subr.bf16.mxu0 0
        %2249 = vmatpush1.bf16.msra.mxu0 %v2216
        %2250 = vmatprep.subr.bf16.mxu0 0
        %2251 = vmatpush1.bf16.msra.mxu0 %v2217
        %2252 = vmatprep.subr.bf16.mxu0 0
        %2253 = vmatpush1.bf16.msra.mxu0 %v2218
        %2254 = vmatprep.subr.bf16.mxu0 0
        %2255 = vmatpush1.bf16.msra.mxu0 %v2219
        %2256 = vmatprep.subr.bf16.mxu0 0
        %2257 = vmatpush1.bf16.msra.mxu0 %v2220
        %2258 = vmatprep.subr.bf16.mxu0 0
        %2259 = vmatpush1.bf16.msra.mxu0 %v2221
        %2260 = vmatprep.subr.bf16.mxu0 0
        %2261 = vmatpush1.bf16.msra.mxu0 %v2222
        %2262 = vmatprep.subr.bf16.mxu0 0
        %2263 = vmatpush1.bf16.msra.mxu0 %v2223
        %2264 = vmatprep.subr.bf16.mxu0 0
        %2265 = vmatpush1.bf16.msra.mxu0 %v2224
        %2266 = vmatprep.subr.bf16.mxu0 0
        %2267 = vmatpush1.bf16.msra.mxu0 %v2225
        %2268 = vmatprep.subr.bf16.mxu0 0
        %2269 = vmatpush1.bf16.msra.mxu0 %v2226
        %2270 = vmatprep.subr.bf16.mxu0 0
        %2271 = vmatpush1.bf16.msra.mxu0 %v2227
        %2272 = vmatprep.subr.bf16.mxu0 0
        %2273 = vmatpush1.bf16.msra.mxu0 %v2228
        %2274 = vmatprep.subr.bf16.mxu0 0
        %2275 = vmatpush1.bf16.msra.mxu0 %v2229
        %2276 = vmatprep.subr.bf16.mxu0 0
        %2277 = vmatpush1.bf16.msra.mxu0 %v2230
        %2278 = vmatprep.subr.bf16.mxu0 0
        %2279 = vmatpush1.bf16.msra.mxu0 %v2231
        %2280 = vmatprep.mubr.bf16.mxu0 %v2112
        %2281 = vmatmul.mubr.bf16.gmra.mrb[0].mxu0 %v2111
        %v2282 = vpop.f32.mrb[0].mxu0
        %v2283 = vadd.f32 %v2150, %v2282
        %v2284 = vpop.f32.mrb[0].mxu0
        %v2285 = vpop.f32.mrb[0].mxu0
        %v2286 = vadd.f32 %v2150, %v2285
        %v2287 = vpop.f32.mrb[0].mxu0
        %2288 = vdwg.mxu0
        %v2289 = vadd.f32 %v1921, %v2283
        %v2290 = vadd.f32 %v1922, %v2286
        %v2291 = vld [vmem:[%s11] sm:$0x1]
        %v2292 = vld [vmem:[%s12] sm:$0x1]
        %2293 = vadd.xlane.f32.xlu0 %v2289
        %v2294 = vpop.xlane.xlu0 %2293
        %2295 = vadd.xlane.f32.xlu0 %v2290
        %v2296 = vpop.xlane.xlu0 %2295
        %v2297 = vmul.f32 %v2294, %v1888
        %v2298 = vmul.f32 %v2296, %v1888
        %v2299 = vsub.f32 %v2289, %v2297
        %v2300 = vsub.f32 %v2290, %v2298
        %v2301 = vmul.f32 %v2299, %v2299
        %v2302 = vmul.f32 %v2300, %v2300
        %2303 = vadd.xlane.f32.xlu0 %v2301
        %v2304 = vpop.xlane.xlu0 %2303
        %2305 = vadd.xlane.f32.xlu0 %v2302
        %v2306 = vpop.xlane.xlu0 %2305
        %v2307 = vmul.f32 %v2304, %v1888
        %v2308 = vmul.f32 %v2306, %v1888
        %v2309 = vadd.f32 %v2307, 1e-12
        %v2310 = vadd.f32 %v2308, 1e-12
        %v2311 = vrsqrt.pop %v2309
        %v2312 = vrsqrt.pop %v2310
        %v2313 = vmul.f32 %v2299, %v2311
        %v2314 = vmul.f32 %v2300, %v2312
        %v2316 = vlaneseq
        %v2317 = vshrl.u32 %v2316, 7
        %v2318 = vsub.s32 0, %v2317
        %v2319 = vrot.slane %v2291, %v2318
        %v2321 = vmul.f32 %v2313, %v2319
        %v2322 = vmul.f32 %v2314, %v2319
        %v2324 = vlaneseq
        %v2325 = vshrl.u32 %v2324, 7
        %v2326 = vsub.s32 0, %v2325
        %v2327 = vrot.slane %v2292, %v2326
        %v2329 = vadd.f32 %v2321, %v2327
        %v2330 = vadd.f32 %v2322, %v2327
        %2331 = vst [vmem:[%s542] sm:$0xff] %v2329
        %2332 = vst [vmem:[%s542 + $0x8] sm:$0xff] %v2330
        %s2333 = sand.u32 %s401, 1
        %s2334 = scalar_lea.sflag [#allocation3], %s2333
        %s2335 = sand.u32 %s401, 1
        %s2336 = smul.addr %s2335, 16
        %s2337 = scalar_lea.vmem [#allocation2], %s2336
        // Predicated region
        $region89: #{encoder_forward.1} parent=87 // pred_check
          %p2338 = pneg %p411
        $region90: #{encoder_forward.1} parent=87 // pred_check_branch
          %2340 = sbr.rel (%p2338) target = $region92
        $region91: #{encoder_forward.1} parent=87 // pred_region
          %s2341 = smul.u32 2, %s31
          %s2343 = ssub.s32 256, 256
          %2344 = vsyncadd %s2334, %s2343
          %s2345 = smul.addr %s2341, 128
          %s2346 = scalar_lea.hbm %s17, %s2345
          %s2347 = sshll.u32 %s2337, 4
          %s2348 = int_to_ptr.vmem [resolvable:$true] %s2347
          %2353 = dma.vmem_to_hbm [thread:$0]  %s2348, 256, %s2346, %s2334, 128, 128, 8
        $region92: #{encoder_forward.1} parent=87 // pred_fallthru
          _
      $region88: #{encoder_forward.1} parent=5 // pred_fallthru
        _
      %p2354 = scmp.le.s32.totalorder 2, %s26
      // Predicated region
      $region93: #{encoder_forward.1} parent=5 // pred_check
        %p2355 = pneg %p2354
      $region94: #{encoder_forward.1} parent=5 // pred_check_branch
        %2357 = sbr.rel (%p2355) target = $region96
      $region95: #{encoder_forward.1} parent=5 // pred_region
        %s2358 = ssub.s32 %s26, 2
        // Predicated region
        $region97: #{encoder_forward.1} parent=95 // pred_check
          %p2359 = pneg %p417
        $region98: #{encoder_forward.1} parent=95 // pred_check_branch
          %2361 = sbr.rel (%p2359) target = $region100
        $region99: #{encoder_forward.1} parent=95 // pred_region
          %s2362 = sand.u32 %s402, 1
          %s2363 = scalar_lea.sflag [#allocation3], %s2362
          %s2364 = sand.u32 %s402, 1
          %s2365 = smul.addr %s2364, 16
          %s2366 = scalar_lea.vmem [#allocation2], %s2365
          %2367 = dma.done %s2363, 256
        $region100: #{encoder_forward.1} parent=95 // pred_fallthru
          _
      $region96: #{encoder_forward.1} parent=5 // pred_fallthru
        _
    $region6: #{encoder_forward.1} parent=1 // loop_footer
      %s30 = sadd.s32 1, %s26
    $region7: #{encoder_forward.1} parent=1 // loop_footer_branch
      %25 = sbr.rel target = $region3
    $region8: #{encoder_forward.1} parent=1 // loop_exit
      _
    %2368 = vsyncpa [#allocation3], 1
    %s2369 = scalar_lea.sflag [#allocation3], 1
    %2370 = vsyncpa %s2369, 1

</llo_original>
